<compile_context>
chip_gen: v7x
topology: tpu7x:2x2x1
jax: 0.10.0
libtpu: 0.0.40
codegen_flags: <defaults>
</compile_context>

<pallas_src>
import functools

import jax
import jax.numpy as jnp
from jax.experimental import pallas as pl
from jax.experimental.pallas import tpu as pltpu


def _attention_kernel(x_ref, wqkv_ref, wout_ref, bout_ref, o_ref, *, heads, scale):
    # x_ref: (1, N, D) tile (one batch element); wqkv: (D, 3D); wout: (D, D);
    # bout: (1, D); o_ref: (1, N, D)
    x = x_ref[0]                                   # (N, D)
    N, D = x.shape
    dh = D // heads
    in_dtype = x.dtype

    # ---- fused QKV projection on the MXU (f32 accumulation) ----
    qkv = jnp.dot(x, wqkv_ref[...], preferred_element_type=jnp.float32)  # (N, 3D)
    qkv = qkv.astype(in_dtype)                     # MXU operands stay in input dtype

    # ---- per-head attention (heads is small & static -> unrolled) ----
    # TODO(synk): optional boolean `mask` path and attn dropout (p=0.0) omitted;
    # module default forward(x, mask=None) with eval-mode dropout is implemented.
    head_outs = []
    for h in range(heads):
        qh = qkv[:, h * dh:(h + 1) * dh]                   # (N, dh)
        kh = qkv[:, D + h * dh:D + (h + 1) * dh]           # (N, dh)
        vh = qkv[:, 2 * D + h * dh:2 * D + (h + 1) * dh]   # (N, dh)

        dots = jnp.dot(qh, kh.T, preferred_element_type=jnp.float32) * scale  # (N, N)
        # numerically-stable softmax over keys, in f32
        dots = dots - jnp.max(dots, axis=-1, keepdims=True)
        e = jnp.exp(dots)
        attn = e / jnp.sum(e, axis=-1, keepdims=True)

        head_outs.append(
            jnp.dot(attn.astype(in_dtype), vh, preferred_element_type=jnp.float32))

    out = jnp.concatenate(head_outs, axis=-1).astype(in_dtype)  # (N, D) = 'b n (h d)'

    # ---- output projection (Linear(dim, dim) with bias) ----
    y = jnp.dot(out, wout_ref[...], preferred_element_type=jnp.float32)
    y = y + bout_ref[...].astype(jnp.float32)
    o_ref[0] = y.astype(o_ref.dtype)


def attention_forward(x, w_qkv, w_out, b_out, *, heads):
    """x: (B, N, D) -> (B, N, D).  Fused multi-head self-attention forward."""
    B, N, D = x.shape
    assert D % heads == 0, "dim must be divisible by heads"
    assert w_qkv.shape == (D, 3 * D) and w_out.shape == (D, D)
    scale = float(D) ** -0.5                      # module uses dim**-0.5 (full dim)

    kernel = functools.partial(_attention_kernel, heads=heads, scale=scale)
    return pl.pallas_call(
        kernel,
        out_shape=jax.ShapeDtypeStruct((B, N, D), x.dtype),
        grid_spec=pltpu.PrefetchScalarGridSpec(
            num_scalar_prefetch=0,
            grid=(B,),
            in_specs=[
                pl.BlockSpec((1, N, D), lambda b: (b, 0, 0)),     # x (per batch)
                pl.BlockSpec((D, 3 * D), lambda b: (0, 0)),       # Wqkv (invariant)
                pl.BlockSpec((D, D), lambda b: (0, 0)),           # Wout (invariant)
                pl.BlockSpec((1, D), lambda b: (0, 0)),           # bout (invariant)
            ],
            out_specs=pl.BlockSpec((1, N, D), lambda b: (b, 0, 0)),
        ),
        compiler_params=pltpu.CompilerParams(
            dimension_semantics=("parallel",)),    # shards batch across TCs (v7x)
    )(x, w_qkv, w_out, b_out)


def attention_ref(x, w_qkv, w_out, b_out, heads):
    """Pure-JAX reference matching the PyTorch module forward (mask=None, eval)."""
    B, N, D = x.shape
    dh = D // heads
    scale = float(D) ** -0.5
    xf = x.astype(jnp.float32)
    qkv = xf @ w_qkv.astype(jnp.float32)                   # (B, N, 3D)
    q, k, v = jnp.split(qkv, 3, axis=-1)

    def split_heads(t):                                     # 'b n (h d) -> b h n d'
        return t.reshape(B, N, heads, dh).transpose(0, 2, 1, 3)

    q, k, v = split_heads(q), split_heads(k), split_heads(v)
    dots = jnp.einsum('bhid,bhjd->bhij', q, k) * scale
    attn = jax.nn.softmax(dots, axis=-1)
    out = jnp.einsum('bhij,bhjd->bhid', attn, v)
    out = out.transpose(0, 2, 1, 3).reshape(B, N, D)        # 'b h n d -> b n (h d)'
    y = out @ w_out.astype(jnp.float32) + b_out.astype(jnp.float32)
    return y.astype(x.dtype)


if __name__ == "__main__":
    B, N, D, H = 2, 8, 32, 8                        # batch=2, seq=8, dim=32, heads=8

    key = jax.random.PRNGKey(0)
    kx, kq, ko, kb = jax.random.split(key, 4)

    x = jax.random.normal(kx, (B, N, D), dtype=jnp.float32)
    # Deterministic parameters (PyTorch Linear-like scaling).
    w_qkv = jax.random.normal(kq, (D, 3 * D), dtype=jnp.float32) * (1.0 / jnp.sqrt(D))
    w_out = jax.random.normal(ko, (D, D), dtype=jnp.float32) * (1.0 / jnp.sqrt(D))
    b_out = jax.random.normal(kb, (1, D), dtype=jnp.float32) * 0.01

    out = attention_forward(x, w_qkv, w_out, b_out, heads=H)
    out = jax.block_until_ready(out)

    ref = attention_ref(x, w_qkv, w_out, b_out, H)
    assert out.shape == (B, N, D)
    err = float(jnp.max(jnp.abs(out - ref)))
    assert err < 1e-3, f"mismatch vs reference: {err}"

    print("KERNEL_OK")
</pallas_src>

<mosaic_0001>
module attributes {stable_mosaic.version = 11 : i64} {
  func.func @_attention_kernel(%arg0: i32, %arg1: memref<1x8x32xf32, #tpu.memory_space<vmem>>, %arg2: memref<32x96xf32, #tpu.memory_space<vmem>>, %arg3: memref<32x32xf32, #tpu.memory_space<vmem>>, %arg4: memref<1x32xf32, #tpu.memory_space<vmem>>, %arg5: memref<1x8x32xf32, #tpu.memory_space<vmem>>) attributes {dimension_semantics = [#tpu.dimension_semantics<parallel>], iteration_bounds = array<i64: 2>, scalar_prefetch = 0 : i64, scratch_operands = 0 : i64, tpu.core_type = #tpu.core_type<tc>, window_params = [{transform_indices = @transform_0, window_bounds = array<i64: 1, 8, 32>}, {pipeline_mode = #tpu.pipeline_mode<synchronous>, transform_indices = @transform_1, window_bounds = array<i64: 32, 96>}, {pipeline_mode = #tpu.pipeline_mode<synchronous>, transform_indices = @transform_2, window_bounds = array<i64: 32, 32>}, {pipeline_mode = #tpu.pipeline_mode<synchronous>, transform_indices = @transform_3, window_bounds = array<i64: 1, 32>}, {transform_indices = @transform_4, window_bounds = array<i64: 1, 8, 32>}]} {
    %c0 = arith.constant 0 : index
    %c0_0 = arith.constant 0 : index
    %c0_1 = arith.constant 0 : index
    %0 = vector.load %arg1[%c0, %c0_0, %c0_1] : memref<1x8x32xf32, #tpu.memory_space<vmem>>, vector<1x8x32xf32>
    %1 = vector.shape_cast %0 : vector<1x8x32xf32> to vector<8x32xf32>
    %c0_2 = arith.constant 0 : index
    %c0_3 = arith.constant 0 : index
    %2 = vector.load %arg2[%c0_2, %c0_3] : memref<32x96xf32, #tpu.memory_space<vmem>>, vector<32x96xf32>
    %cst = arith.constant dense<0.000000e+00> : vector<8x96xf32>
    %3 = tpu.matmul %1, %2, %cst {dimension_numbers = #tpu.dot_dimension_numbers<[1], [0], [0], [1], [0, 0, 1, 1], [], []>} : vector<8x32xf32>, vector<32x96xf32>, vector<8x96xf32> -> vector<8x96xf32>
    %4 = vector.extract_strided_slice %3 {offsets = [0, 0], sizes = [8, 4], strides = [1, 1]} : vector<8x96xf32> to vector<8x4xf32>
    %5 = vector.extract_strided_slice %3 {offsets = [0, 32], sizes = [8, 4], strides = [1, 1]} : vector<8x96xf32> to vector<8x4xf32>
    %6 = vector.extract_strided_slice %3 {offsets = [0, 64], sizes = [8, 4], strides = [1, 1]} : vector<8x96xf32> to vector<8x4xf32>
    %7 = tpu.transpose %5, [1, 0] : vector<8x4xf32> -> vector<4x8xf32>
    %cst_4 = arith.constant dense<0.000000e+00> : vector<8x8xf32>
    %8 = tpu.matmul %4, %7, %cst_4 {dimension_numbers = #tpu.dot_dimension_numbers<[1], [0], [0], [1], [0, 0, 1, 1], [], []>} : vector<8x4xf32>, vector<4x8xf32>, vector<8x8xf32> -> vector<8x8xf32>
    %cst_5 = arith.constant 0.176776692 : f32
    %9 = vector.broadcast %cst_5 : f32 to vector<8x8xf32>
    %10 = arith.mulf %8, %9 : vector<8x8xf32>
    %cst_6 = arith.constant dense<0xFF800000> : vector<8xf32>
    %11 = vector.multi_reduction <maximumf>, %10, %cst_6 [1] : vector<8x8xf32> to vector<8xf32>
    %12 = vector.shape_cast %11 : vector<8xf32> to vector<8x1xf32>
    %13 = vector.broadcast %12 : vector<8x1xf32> to vector<8x8xf32>
    %14 = arith.subf %10, %13 : vector<8x8xf32>
    %15 = math.exp %14 : vector<8x8xf32>
    %cst_7 = arith.constant dense<0.000000e+00> : vector<8xf32>
    %16 = vector.multi_reduction <add>, %15, %cst_7 [1] : vector<8x8xf32> to vector<8xf32>
    %17 = vector.shape_cast %16 : vector<8xf32> to vector<8x1xf32>
    %18 = vector.broadcast %17 : vector<8x1xf32> to vector<8x8xf32>
    %19 = arith.divf %15, %18 : vector<8x8xf32>
    %cst_8 = arith.constant dense<0.000000e+00> : vector<8x4xf32>
    %20 = tpu.matmul %19, %6, %cst_8 {dimension_numbers = #tpu.dot_dimension_numbers<[1], [0], [0], [1], [0, 0, 1, 1], [], []>} : vector<8x8xf32>, vector<8x4xf32>, vector<8x4xf32> -> vector<8x4xf32>
    %21 = vector.extract_strided_slice %3 {offsets = [0, 4], sizes = [8, 4], strides = [1, 1]} : vector<8x96xf32> to vector<8x4xf32>
    %22 = vector.extract_strided_slice %3 {offsets = [0, 36], sizes = [8, 4], strides = [1, 1]} : vector<8x96xf32> to vector<8x4xf32>
    %23 = vector.extract_strided_slice %3 {offsets = [0, 68], sizes = [8, 4], strides = [1, 1]} : vector<8x96xf32> to vector<8x4xf32>
    %24 = tpu.transpose %22, [1, 0] : vector<8x4xf32> -> vector<4x8xf32>
    %cst_9 = arith.constant dense<0.000000e+00> : vector<8x8xf32>
    %25 = tpu.matmul %21, %24, %cst_9 {dimension_numbers = #tpu.dot_dimension_numbers<[1], [0], [0], [1], [0, 0, 1, 1], [], []>} : vector<8x4xf32>, vector<4x8xf32>, vector<8x8xf32> -> vector<8x8xf32>
    %cst_10 = arith.constant 0.176776692 : f32
    %26 = vector.broadcast %cst_10 : f32 to vector<8x8xf32>
    %27 = arith.mulf %25, %26 : vector<8x8xf32>
    %cst_11 = arith.constant dense<0xFF800000> : vector<8xf32>
    %28 = vector.multi_reduction <maximumf>, %27, %cst_11 [1] : vector<8x8xf32> to vector<8xf32>
    %29 = vector.shape_cast %28 : vector<8xf32> to vector<8x1xf32>
    %30 = vector.broadcast %29 : vector<8x1xf32> to vector<8x8xf32>
    %31 = arith.subf %27, %30 : vector<8x8xf32>
    %32 = math.exp %31 : vector<8x8xf32>
    %cst_12 = arith.constant dense<0.000000e+00> : vector<8xf32>
    %33 = vector.multi_reduction <add>, %32, %cst_12 [1] : vector<8x8xf32> to vector<8xf32>
    %34 = vector.shape_cast %33 : vector<8xf32> to vector<8x1xf32>
    %35 = vector.broadcast %34 : vector<8x1xf32> to vector<8x8xf32>
    %36 = arith.divf %32, %35 : vector<8x8xf32>
    %cst_13 = arith.constant dense<0.000000e+00> : vector<8x4xf32>
    %37 = tpu.matmul %36, %23, %cst_13 {dimension_numbers = #tpu.dot_dimension_numbers<[1], [0], [0], [1], [0, 0, 1, 1], [], []>} : vector<8x8xf32>, vector<8x4xf32>, vector<8x4xf32> -> vector<8x4xf32>
    %38 = vector.extract_strided_slice %3 {offsets = [0, 8], sizes = [8, 4], strides = [1, 1]} : vector<8x96xf32> to vector<8x4xf32>
    %39 = vector.extract_strided_slice %3 {offsets = [0, 40], sizes = [8, 4], strides = [1, 1]} : vector<8x96xf32> to vector<8x4xf32>
    %40 = vector.extract_strided_slice %3 {offsets = [0, 72], sizes = [8, 4], strides = [1, 1]} : vector<8x96xf32> to vector<8x4xf32>
    %41 = tpu.transpose %39, [1, 0] : vector<8x4xf32> -> vector<4x8xf32>
    %cst_14 = arith.constant dense<0.000000e+00> : vector<8x8xf32>
    %42 = tpu.matmul %38, %41, %cst_14 {dimension_numbers = #tpu.dot_dimension_numbers<[1], [0], [0], [1], [0, 0, 1, 1], [], []>} : vector<8x4xf32>, vector<4x8xf32>, vector<8x8xf32> -> vector<8x8xf32>
    %cst_15 = arith.constant 0.176776692 : f32
    %43 = vector.broadcast %cst_15 : f32 to vector<8x8xf32>
    %44 = arith.mulf %42, %43 : vector<8x8xf32>
    %cst_16 = arith.constant dense<0xFF800000> : vector<8xf32>
    %45 = vector.multi_reduction <maximumf>, %44, %cst_16 [1] : vector<8x8xf32> to vector<8xf32>
    %46 = vector.shape_cast %45 : vector<8xf32> to vector<8x1xf32>
    %47 = vector.broadcast %46 : vector<8x1xf32> to vector<8x8xf32>
    %48 = arith.subf %44, %47 : vector<8x8xf32>
    %49 = math.exp %48 : vector<8x8xf32>
    %cst_17 = arith.constant dense<0.000000e+00> : vector<8xf32>
    %50 = vector.multi_reduction <add>, %49, %cst_17 [1] : vector<8x8xf32> to vector<8xf32>
    %51 = vector.shape_cast %50 : vector<8xf32> to vector<8x1xf32>
    %52 = vector.broadcast %51 : vector<8x1xf32> to vector<8x8xf32>
    %53 = arith.divf %49, %52 : vector<8x8xf32>
    %cst_18 = arith.constant dense<0.000000e+00> : vector<8x4xf32>
    %54 = tpu.matmul %53, %40, %cst_18 {dimension_numbers = #tpu.dot_dimension_numbers<[1], [0], [0], [1], [0, 0, 1, 1], [], []>} : vector<8x8xf32>, vector<8x4xf32>, vector<8x4xf32> -> vector<8x4xf32>
    %55 = vector.extract_strided_slice %3 {offsets = [0, 12], sizes = [8, 4], strides = [1, 1]} : vector<8x96xf32> to vector<8x4xf32>
    %56 = vector.extract_strided_slice %3 {offsets = [0, 44], sizes = [8, 4], strides = [1, 1]} : vector<8x96xf32> to vector<8x4xf32>
    %57 = vector.extract_strided_slice %3 {offsets = [0, 76], sizes = [8, 4], strides = [1, 1]} : vector<8x96xf32> to vector<8x4xf32>
    %58 = tpu.transpose %56, [1, 0] : vector<8x4xf32> -> vector<4x8xf32>
    %cst_19 = arith.constant dense<0.000000e+00> : vector<8x8xf32>
    %59 = tpu.matmul %55, %58, %cst_19 {dimension_numbers = #tpu.dot_dimension_numbers<[1], [0], [0], [1], [0, 0, 1, 1], [], []>} : vector<8x4xf32>, vector<4x8xf32>, vector<8x8xf32> -> vector<8x8xf32>
    %cst_20 = arith.constant 0.176776692 : f32
    %60 = vector.broadcast %cst_20 : f32 to vector<8x8xf32>
    %61 = arith.mulf %59, %60 : vector<8x8xf32>
    %cst_21 = arith.constant dense<0xFF800000> : vector<8xf32>
    %62 = vector.multi_reduction <maximumf>, %61, %cst_21 [1] : vector<8x8xf32> to vector<8xf32>
    %63 = vector.shape_cast %62 : vector<8xf32> to vector<8x1xf32>
    %64 = vector.broadcast %63 : vector<8x1xf32> to vector<8x8xf32>
    %65 = arith.subf %61, %64 : vector<8x8xf32>
    %66 = math.exp %65 : vector<8x8xf32>
    %cst_22 = arith.constant dense<0.000000e+00> : vector<8xf32>
    %67 = vector.multi_reduction <add>, %66, %cst_22 [1] : vector<8x8xf32> to vector<8xf32>
    %68 = vector.shape_cast %67 : vector<8xf32> to vector<8x1xf32>
    %69 = vector.broadcast %68 : vector<8x1xf32> to vector<8x8xf32>
    %70 = arith.divf %66, %69 : vector<8x8xf32>
    %cst_23 = arith.constant dense<0.000000e+00> : vector<8x4xf32>
    %71 = tpu.matmul %70, %57, %cst_23 {dimension_numbers = #tpu.dot_dimension_numbers<[1], [0], [0], [1], [0, 0, 1, 1], [], []>} : vector<8x8xf32>, vector<8x4xf32>, vector<8x4xf32> -> vector<8x4xf32>
    %72 = vector.extract_strided_slice %3 {offsets = [0, 16], sizes = [8, 4], strides = [1, 1]} : vector<8x96xf32> to vector<8x4xf32>
    %73 = vector.extract_strided_slice %3 {offsets = [0, 48], sizes = [8, 4], strides = [1, 1]} : vector<8x96xf32> to vector<8x4xf32>
    %74 = vector.extract_strided_slice %3 {offsets = [0, 80], sizes = [8, 4], strides = [1, 1]} : vector<8x96xf32> to vector<8x4xf32>
    %75 = tpu.transpose %73, [1, 0] : vector<8x4xf32> -> vector<4x8xf32>
    %cst_24 = arith.constant dense<0.000000e+00> : vector<8x8xf32>
    %76 = tpu.matmul %72, %75, %cst_24 {dimension_numbers = #tpu.dot_dimension_numbers<[1], [0], [0], [1], [0, 0, 1, 1], [], []>} : vector<8x4xf32>, vector<4x8xf32>, vector<8x8xf32> -> vector<8x8xf32>
    %cst_25 = arith.constant 0.176776692 : f32
    %77 = vector.broadcast %cst_25 : f32 to vector<8x8xf32>
    %78 = arith.mulf %76, %77 : vector<8x8xf32>
    %cst_26 = arith.constant dense<0xFF800000> : vector<8xf32>
    %79 = vector.multi_reduction <maximumf>, %78, %cst_26 [1] : vector<8x8xf32> to vector<8xf32>
    %80 = vector.shape_cast %79 : vector<8xf32> to vector<8x1xf32>
    %81 = vector.broadcast %80 : vector<8x1xf32> to vector<8x8xf32>
    %82 = arith.subf %78, %81 : vector<8x8xf32>
    %83 = math.exp %82 : vector<8x8xf32>
    %cst_27 = arith.constant dense<0.000000e+00> : vector<8xf32>
    %84 = vector.multi_reduction <add>, %83, %cst_27 [1] : vector<8x8xf32> to vector<8xf32>
    %85 = vector.shape_cast %84 : vector<8xf32> to vector<8x1xf32>
    %86 = vector.broadcast %85 : vector<8x1xf32> to vector<8x8xf32>
    %87 = arith.divf %83, %86 : vector<8x8xf32>
    %cst_28 = arith.constant dense<0.000000e+00> : vector<8x4xf32>
    %88 = tpu.matmul %87, %74, %cst_28 {dimension_numbers = #tpu.dot_dimension_numbers<[1], [0], [0], [1], [0, 0, 1, 1], [], []>} : vector<8x8xf32>, vector<8x4xf32>, vector<8x4xf32> -> vector<8x4xf32>
    %89 = vector.extract_strided_slice %3 {offsets = [0, 20], sizes = [8, 4], strides = [1, 1]} : vector<8x96xf32> to vector<8x4xf32>
    %90 = vector.extract_strided_slice %3 {offsets = [0, 52], sizes = [8, 4], strides = [1, 1]} : vector<8x96xf32> to vector<8x4xf32>
    %91 = vector.extract_strided_slice %3 {offsets = [0, 84], sizes = [8, 4], strides = [1, 1]} : vector<8x96xf32> to vector<8x4xf32>
    %92 = tpu.transpose %90, [1, 0] : vector<8x4xf32> -> vector<4x8xf32>
    %cst_29 = arith.constant dense<0.000000e+00> : vector<8x8xf32>
    %93 = tpu.matmul %89, %92, %cst_29 {dimension_numbers = #tpu.dot_dimension_numbers<[1], [0], [0], [1], [0, 0, 1, 1], [], []>} : vector<8x4xf32>, vector<4x8xf32>, vector<8x8xf32> -> vector<8x8xf32>
    %cst_30 = arith.constant 0.176776692 : f32
    %94 = vector.broadcast %cst_30 : f32 to vector<8x8xf32>
    %95 = arith.mulf %93, %94 : vector<8x8xf32>
    %cst_31 = arith.constant dense<0xFF800000> : vector<8xf32>
    %96 = vector.multi_reduction <maximumf>, %95, %cst_31 [1] : vector<8x8xf32> to vector<8xf32>
    %97 = vector.shape_cast %96 : vector<8xf32> to vector<8x1xf32>
    %98 = vector.broadcast %97 : vector<8x1xf32> to vector<8x8xf32>
    %99 = arith.subf %95, %98 : vector<8x8xf32>
    %100 = math.exp %99 : vector<8x8xf32>
    %cst_32 = arith.constant dense<0.000000e+00> : vector<8xf32>
    %101 = vector.multi_reduction <add>, %100, %cst_32 [1] : vector<8x8xf32> to vector<8xf32>
    %102 = vector.shape_cast %101 : vector<8xf32> to vector<8x1xf32>
    %103 = vector.broadcast %102 : vector<8x1xf32> to vector<8x8xf32>
    %104 = arith.divf %100, %103 : vector<8x8xf32>
    %cst_33 = arith.constant dense<0.000000e+00> : vector<8x4xf32>
    %105 = tpu.matmul %104, %91, %cst_33 {dimension_numbers = #tpu.dot_dimension_numbers<[1], [0], [0], [1], [0, 0, 1, 1], [], []>} : vector<8x8xf32>, vector<8x4xf32>, vector<8x4xf32> -> vector<8x4xf32>
    %106 = vector.extract_strided_slice %3 {offsets = [0, 24], sizes = [8, 4], strides = [1, 1]} : vector<8x96xf32> to vector<8x4xf32>
    %107 = vector.extract_strided_slice %3 {offsets = [0, 56], sizes = [8, 4], strides = [1, 1]} : vector<8x96xf32> to vector<8x4xf32>
    %108 = vector.extract_strided_slice %3 {offsets = [0, 88], sizes = [8, 4], strides = [1, 1]} : vector<8x96xf32> to vector<8x4xf32>
    %109 = tpu.transpose %107, [1, 0] : vector<8x4xf32> -> vector<4x8xf32>
    %cst_34 = arith.constant dense<0.000000e+00> : vector<8x8xf32>
    %110 = tpu.matmul %106, %109, %cst_34 {dimension_numbers = #tpu.dot_dimension_numbers<[1], [0], [0], [1], [0, 0, 1, 1], [], []>} : vector<8x4xf32>, vector<4x8xf32>, vector<8x8xf32> -> vector<8x8xf32>
    %cst_35 = arith.constant 0.176776692 : f32
    %111 = vector.broadcast %cst_35 : f32 to vector<8x8xf32>
    %112 = arith.mulf %110, %111 : vector<8x8xf32>
    %cst_36 = arith.constant dense<0xFF800000> : vector<8xf32>
    %113 = vector.multi_reduction <maximumf>, %112, %cst_36 [1] : vector<8x8xf32> to vector<8xf32>
    %114 = vector.shape_cast %113 : vector<8xf32> to vector<8x1xf32>
    %115 = vector.broadcast %114 : vector<8x1xf32> to vector<8x8xf32>
    %116 = arith.subf %112, %115 : vector<8x8xf32>
    %117 = math.exp %116 : vector<8x8xf32>
    %cst_37 = arith.constant dense<0.000000e+00> : vector<8xf32>
    %118 = vector.multi_reduction <add>, %117, %cst_37 [1] : vector<8x8xf32> to vector<8xf32>
    %119 = vector.shape_cast %118 : vector<8xf32> to vector<8x1xf32>
    %120 = vector.broadcast %119 : vector<8x1xf32> to vector<8x8xf32>
    %121 = arith.divf %117, %120 : vector<8x8xf32>
    %cst_38 = arith.constant dense<0.000000e+00> : vector<8x4xf32>
    %122 = tpu.matmul %121, %108, %cst_38 {dimension_numbers = #tpu.dot_dimension_numbers<[1], [0], [0], [1], [0, 0, 1, 1], [], []>} : vector<8x8xf32>, vector<8x4xf32>, vector<8x4xf32> -> vector<8x4xf32>
    %123 = vector.extract_strided_slice %3 {offsets = [0, 28], sizes = [8, 4], strides = [1, 1]} : vector<8x96xf32> to vector<8x4xf32>
    %124 = vector.extract_strided_slice %3 {offsets = [0, 60], sizes = [8, 4], strides = [1, 1]} : vector<8x96xf32> to vector<8x4xf32>
    %125 = vector.extract_strided_slice %3 {offsets = [0, 92], sizes = [8, 4], strides = [1, 1]} : vector<8x96xf32> to vector<8x4xf32>
    %126 = tpu.transpose %124, [1, 0] : vector<8x4xf32> -> vector<4x8xf32>
    %cst_39 = arith.constant dense<0.000000e+00> : vector<8x8xf32>
    %127 = tpu.matmul %123, %126, %cst_39 {dimension_numbers = #tpu.dot_dimension_numbers<[1], [0], [0], [1], [0, 0, 1, 1], [], []>} : vector<8x4xf32>, vector<4x8xf32>, vector<8x8xf32> -> vector<8x8xf32>
    %cst_40 = arith.constant 0.176776692 : f32
    %128 = vector.broadcast %cst_40 : f32 to vector<8x8xf32>
    %129 = arith.mulf %127, %128 : vector<8x8xf32>
    %cst_41 = arith.constant dense<0xFF800000> : vector<8xf32>
    %130 = vector.multi_reduction <maximumf>, %129, %cst_41 [1] : vector<8x8xf32> to vector<8xf32>
    %131 = vector.shape_cast %130 : vector<8xf32> to vector<8x1xf32>
    %132 = vector.broadcast %131 : vector<8x1xf32> to vector<8x8xf32>
    %133 = arith.subf %129, %132 : vector<8x8xf32>
    %134 = math.exp %133 : vector<8x8xf32>
    %cst_42 = arith.constant dense<0.000000e+00> : vector<8xf32>
    %135 = vector.multi_reduction <add>, %134, %cst_42 [1] : vector<8x8xf32> to vector<8xf32>
    %136 = vector.shape_cast %135 : vector<8xf32> to vector<8x1xf32>
    %137 = vector.broadcast %136 : vector<8x1xf32> to vector<8x8xf32>
    %138 = arith.divf %134, %137 : vector<8x8xf32>
    %cst_43 = arith.constant dense<0.000000e+00> : vector<8x4xf32>
    %139 = tpu.matmul %138, %125, %cst_43 {dimension_numbers = #tpu.dot_dimension_numbers<[1], [0], [0], [1], [0, 0, 1, 1], [], []>} : vector<8x8xf32>, vector<8x4xf32>, vector<8x4xf32> -> vector<8x4xf32>
    %140 = tpu.concatenate %20, %37, %54, %71, %88, %105, %122, %139 in 1 : vector<8x4xf32>, vector<8x4xf32>, vector<8x4xf32>, vector<8x4xf32>, vector<8x4xf32>, vector<8x4xf32>, vector<8x4xf32>, vector<8x4xf32> -> vector<8x32xf32>
    %c0_44 = arith.constant 0 : index
    %c0_45 = arith.constant 0 : index
    %141 = vector.load %arg3[%c0_44, %c0_45] : memref<32x32xf32, #tpu.memory_space<vmem>>, vector<32x32xf32>
    %cst_46 = arith.constant dense<0.000000e+00> : vector<8x32xf32>
    %142 = tpu.matmul %140, %141, %cst_46 {dimension_numbers = #tpu.dot_dimension_numbers<[1], [0], [0], [1], [0, 0, 1, 1], [], []>} : vector<8x32xf32>, vector<32x32xf32>, vector<8x32xf32> -> vector<8x32xf32>
    %c0_47 = arith.constant 0 : index
    %c0_48 = arith.constant 0 : index
    %143 = vector.load %arg4[%c0_47, %c0_48] : memref<1x32xf32, #tpu.memory_space<vmem>>, vector<1x32xf32>
    %144 = vector.broadcast %143 : vector<1x32xf32> to vector<8x32xf32>
    %145 = arith.addf %142, %144 : vector<8x32xf32>
    %c0_49 = arith.constant 0 : index
    %c0_50 = arith.constant 0 : index
    %c0_51 = arith.constant 0 : index
    %146 = vector.load %arg5[%c0_49, %c0_50, %c0_51] : memref<1x8x32xf32, #tpu.memory_space<vmem>>, vector<1x8x32xf32>
    %147 = vector.shape_cast %146 : vector<1x8x32xf32> to vector<8x32xf32>
    %148 = vector.shape_cast %145 : vector<8x32xf32> to vector<1x8x32xf32>
    tpu.vector_store %arg5[%c0_49, %c0_50, %c0_51], %148 {strides = array<i32>} : memref<1x8x32xf32, #tpu.memory_space<vmem>>, vector<1x8x32xf32>,
    return
  }
  func.func @transform_0(%arg0: i32) -> (i32, i32, i32) {
    %c0_i32 = arith.constant 0 : i32
    %c0_i32_0 = arith.constant 0 : i32
    %c0_i32_1 = arith.constant 0 : i32
    return %arg0, %c0_i32, %c0_i32_0 : i32, i32, i32
  }
  func.func @transform_1(%arg0: i32) -> (i32, i32) {
    %c0_i32 = arith.constant 0 : i32
    %c0_i32_0 = arith.constant 0 : i32
    %c0_i32_1 = arith.constant 0 : i32
    return %c0_i32, %c0_i32_0 : i32, i32
  }
  func.func @transform_2(%arg0: i32) -> (i32, i32) {
    %c0_i32 = arith.constant 0 : i32
    %c0_i32_0 = arith.constant 0 : i32
    %c0_i32_1 = arith.constant 0 : i32
    return %c0_i32, %c0_i32_0 : i32, i32
  }
  func.func @transform_3(%arg0: i32) -> (i32, i32) {
    %c0_i32 = arith.constant 0 : i32
    %c0_i32_0 = arith.constant 0 : i32
    %c0_i32_1 = arith.constant 0 : i32
    return %c0_i32, %c0_i32_0 : i32, i32
  }
  func.func @transform_4(%arg0: i32) -> (i32, i32, i32) {
    %c0_i32 = arith.constant 0 : i32
    %c0_i32_0 = arith.constant 0 : i32
    %c0_i32_1 = arith.constant 0 : i32
    return %arg0, %c0_i32, %c0_i32_0 : i32, i32, i32
  }
}

</mosaic_0001>

<llo_original>
// kernel: tpu_custom_call.1
$region0: #{tpu_custom_call.1}
  #allocation0 [shape = 'u32[]', space=smem, size = 0x4, offset = 0x4, fixed_abs, tag = 'smem constant byte address 0x4 - core index']
  #allocation1 [shape = 'u32[144,128]{1,0:T(1,128)}', space=vmem, size = 0x12000, scoped, tag = 'internal scratch']
  %s0 = inlined_call_operand.hbm [shape: f32[2,8,32], index: 0, kind: input, shape index: {}]
  %s1 = inlined_call_operand.hbm [shape: f32[32,96], index: 1, kind: input, shape index: {}]
  %s2 = inlined_call_operand.hbm [shape: f32[32,32], index: 2, kind: input, shape index: {}]
  %s3 = inlined_call_operand.vmem [shape: f32[1,32], index: 3, kind: input, shape index: {}]
  %s4 = inlined_call_operand.hbm [shape: f32[2,8,32], index: 4, kind: output, shape index: {}]
  %s5 = sld [smem:[#allocation0]]
  $region61: #{tpu_custom_call.1} parent=0
    _
  %s7 = ssub.s32 1, %s5
  %s8 = scalar_select 0, %s7, %s5
  $region1: #{tpu_custom_call.1} parent=0
    #allocation2 [shape = 'u8[8192]{0}', space=vmem, size = 0x2000, scoped, tag = 'input window, operand 0']
    #allocation3 [shape = 's32[2]{0}', space=sflag, size = 0x8, scoped, tag = 'scoped memory for tpu_custom_call.1']
    #allocation4 [shape = 's32[2]{0}', space=sflag, size = 0x8, scoped, tag = 'scoped memory for tpu_custom_call.1']
    #allocation5 [shape = 'u8[16384]{0}', space=vmem, size = 0x4000, scoped, tag = 'input window, operand 1, single buffered']
    #allocation6 [shape = 's32[1]{0}', space=sflag, size = 0x4, scoped, tag = 'scoped memory for tpu_custom_call.1']
    #allocation7 [shape = 'u8[16384]{0}', space=vmem, size = 0x4000, scoped, tag = 'input window, operand 2, single buffered']
    #allocation8 [shape = 'u8[8192]{0}', space=vmem, size = 0x2000, scoped, tag = 'output window, operand 0']
    %9 = vsyncpa [#allocation3], 0
    %s10 = scalar_lea.sflag [#allocation3], 1
    %11 = vsyncpa %s10, 0
    %12 = vsyncpa [#allocation6], 0
    %13 = vsyncpa [#allocation4], 0
    %s14 = scalar_lea.sflag [#allocation4], 1
    %15 = vsyncpa %s14, 0
    loop: start=0, step=1, limit=4
    $region2: #{tpu_custom_call.1} parent=1 // loop_pre_header
      _
    $region3: #{tpu_custom_call.1} parent=1 // loop_header
      %s17 = sphi 0, %s21
      %p18 = scmp.ge.s32.totalorder %s17, 4
      %s27 = sphi 0, %s29
      %s30 = sphi 0, %s27
      %s31 = sphi 0, %s30
      %s47 = sphi 0, %s31
      %s51 = sphi 0, %s51
      %s53 = sphi 0, %s51
      %s54 = sphi 0, %s53
      %s68 = sphi 0, %s54
      %s72 = sphi 0, %s72
      %s74 = sphi 0, %s72
      %s75 = sphi 0, %s74
      %s89 = sphi 0, %s75
      %s93 = sphi 0, %s93
      %s95 = sphi 0, %s93
      %s96 = sphi 0, %s95
      %s110 = sphi 0, %s96
      %s116 = sphi 0, %s118
      %s119 = sphi 0, %s116
      %s120 = sphi 0, %s119
      %s136 = sphi 0, %s120
    $region4: #{tpu_custom_call.1} parent=1 // loop_header_branch
      %20 = sbr.rel (%p18) target = $region8
    $region5: #{tpu_custom_call.1} parent=1 // loop_body
      %s22 = ssub.s32 %s17, 1
      %s23 = ssub.s32 %s17, 2
      %s24 = sadd.s32 %s17, 1
      %s25 = ssub.s32 %s17, %s24
      %p26 = scmp.eq.s32.totalorder %s25, 0
      %s28 = sadd.s32 %s27, 1
      %s29 = scalar_select %p26, %s27, %s28
      %p32 = pneg %p26
      %p33 = scmp.eq.s32.totalorder %s17, 1
      %p34 = por %p32, %p33
      %p35 = scmp.ne.s32.totalorder %s27, %s30
      %p36 = scmp.eq.s32.totalorder %s17, 0
      %p37 = por %p35, %p36
      %p38 = scmp.ne.s32.totalorder %s27, %s30
      %p39 = scmp.eq.s32.totalorder %s22, 1
      %p40 = por %p38, %p39
      %p41 = scmp.ne.s32.totalorder %s30, %s31
      %p42 = scmp.eq.s32.totalorder %s22, 0
      %p43 = por %p41, %p42
      %p44 = scmp.ne.s32.totalorder %s30, %s31
      %p45 = scmp.eq.s32.totalorder %s23, 1
      %p46 = por %p44, %p45
      %p48 = scmp.ne.s32.totalorder %s31, %s47
      %p49 = scmp.eq.s32.totalorder %s23, 0
      %p50 = por %p48, %p49
      %s52 = sadd.s32 %s51, 1
      %p55 = scmp.eq.s32.totalorder %s17, 1
      %p56 = scmp.ne.s32.totalorder %s51, %s53
      %p57 = scmp.eq.s32.totalorder %s17, 0
      %p58 = por %p56, %p57
      %p59 = scmp.ne.s32.totalorder %s51, %s53
      %p60 = scmp.eq.s32.totalorder %s22, 1
      %p61 = por %p59, %p60
      %p62 = scmp.ne.s32.totalorder %s53, %s54
      %p63 = scmp.eq.s32.totalorder %s22, 0
      %p64 = por %p62, %p63
      %p65 = scmp.ne.s32.totalorder %s53, %s54
      %p66 = scmp.eq.s32.totalorder %s23, 1
      %p67 = por %p65, %p66
      %p69 = scmp.ne.s32.totalorder %s54, %s68
      %p70 = scmp.eq.s32.totalorder %s23, 0
      %p71 = por %p69, %p70
      %s73 = sadd.s32 %s72, 1
      %p76 = scmp.eq.s32.totalorder %s17, 1
      %p77 = scmp.ne.s32.totalorder %s72, %s74
      %p78 = scmp.eq.s32.totalorder %s17, 0
      %p79 = por %p77, %p78
      %p80 = scmp.ne.s32.totalorder %s72, %s74
      %p81 = scmp.eq.s32.totalorder %s22, 1
      %p82 = por %p80, %p81
      %p83 = scmp.ne.s32.totalorder %s74, %s75
      %p84 = scmp.eq.s32.totalorder %s22, 0
      %p85 = por %p83, %p84
      %p86 = scmp.ne.s32.totalorder %s74, %s75
      %p87 = scmp.eq.s32.totalorder %s23, 1
      %p88 = por %p86, %p87
      %p90 = scmp.ne.s32.totalorder %s75, %s89
      %p91 = scmp.eq.s32.totalorder %s23, 0
      %p92 = por %p90, %p91
      %s94 = sadd.s32 %s93, 1
      %p97 = scmp.eq.s32.totalorder %s17, 1
      %p98 = scmp.ne.s32.totalorder %s93, %s95
      %p99 = scmp.eq.s32.totalorder %s17, 0
      %p100 = por %p98, %p99
      %p101 = scmp.ne.s32.totalorder %s93, %s95
      %p102 = scmp.eq.s32.totalorder %s22, 1
      %p103 = por %p101, %p102
      %p104 = scmp.ne.s32.totalorder %s95, %s96
      %p105 = scmp.eq.s32.totalorder %s22, 0
      %p106 = por %p104, %p105
      %p107 = scmp.ne.s32.totalorder %s95, %s96
      %p108 = scmp.eq.s32.totalorder %s23, 1
      %p109 = por %p107, %p108
      %p111 = scmp.ne.s32.totalorder %s96, %s110
      %p112 = scmp.eq.s32.totalorder %s23, 0
      %p113 = por %p111, %p112
      %s114 = ssub.s32 %s17, %s24
      %p115 = scmp.eq.s32.totalorder %s114, 0
      %s117 = sadd.s32 %s116, 1
      %s118 = scalar_select %p115, %s116, %s117
      %p121 = pneg %p115
      %p122 = scmp.eq.s32.totalorder %s17, 1
      %p123 = por %p121, %p122
      %p124 = scmp.ne.s32.totalorder %s116, %s119
      %p125 = scmp.eq.s32.totalorder %s17, 0
      %p126 = por %p124, %p125
      %p127 = scmp.ne.s32.totalorder %s116, %s119
      %p128 = scmp.eq.s32.totalorder %s22, 1
      %p129 = por %p127, %p128
      %p130 = scmp.ne.s32.totalorder %s119, %s120
      %p131 = scmp.eq.s32.totalorder %s22, 0
      %p132 = por %p130, %p131
      %p133 = scmp.ne.s32.totalorder %s119, %s120
      %p134 = scmp.eq.s32.totalorder %s23, 1
      %p135 = por %p133, %p134
      %p137 = scmp.ne.s32.totalorder %s120, %s136
      %p138 = scmp.eq.s32.totalorder %s23, 0
      %p139 = por %p137, %p138
      %p140 = scmp.le.s32.totalorder 1, %s17
      %p141 = scmp.lt.s32.totalorder %s17, 3
      %p142 = pnand %p140, %p141
      %p143 = pneg %p142
      // Predicated region
      $region9: #{tpu_custom_call.1} parent=5 // pred_check
        _
      $region10: #{tpu_custom_call.1} parent=5 // pred_check_branch
        %145 = sbr.rel (%p142) target = $region12
      $region11: #{tpu_custom_call.1} parent=5 // pred_region
        %s146 = ssub.s32 %s17, 1
        // Predicated region
        $region13: #{tpu_custom_call.1} parent=11 // pred_check
          %p147 = pneg %p64
        $region14: #{tpu_custom_call.1} parent=11 // pred_check_branch
          %149 = sbr.rel (%p147) target = $region16
        $region15: #{tpu_custom_call.1} parent=11 // pred_region
          %s151 = ssub.s32 512, 512
          %152 = vsyncadd [#allocation6], %s151
          %s153 = sshll.u32 [#allocation5], 4
          %s154 = int_to_ptr.vmem [resolvable:$true] %s153
          %159 = dma.hbm_to_vmem [thread:$0]  %s1, 512, %s154, [#allocation6], 128, 128, 8
        $region16: #{tpu_custom_call.1} parent=11 // pred_fallthru
          _
        // Predicated region
        $region17: #{tpu_custom_call.1} parent=11 // pred_check
          %p160 = pneg %p85
        $region18: #{tpu_custom_call.1} parent=11 // pred_check_branch
          %162 = sbr.rel (%p160) target = $region20
        $region19: #{tpu_custom_call.1} parent=11 // pred_region
          %s164 = ssub.s32 512, 512
          %165 = vsyncadd [#allocation6], %s164
          %s166 = sshll.u32 [#allocation7], 4
          %s167 = int_to_ptr.vmem [resolvable:$true] %s166
          %172 = dma.hbm_to_vmem [thread:$0]  %s2, 512, %s167, [#allocation6], 128, 128, 8
        $region20: #{tpu_custom_call.1} parent=11 // pred_fallthru
          _
        // Predicated region
        $region21: #{tpu_custom_call.1} parent=11 // pred_check
          %p173 = pneg %p106
        $region22: #{tpu_custom_call.1} parent=11 // pred_check_branch
          %175 = sbr.rel (%p173) target = $region24
        $region23: #{tpu_custom_call.1} parent=11 // pred_region
          _
        $region24: #{tpu_custom_call.1} parent=11 // pred_fallthru
          _
      $region12: #{tpu_custom_call.1} parent=5 // pred_fallthru
        _
      %p176 = scmp.lt.s32.totalorder %s17, 2
      // Predicated region
      $region25: #{tpu_custom_call.1} parent=5 // pred_check
        %p177 = pneg %p176
      $region26: #{tpu_custom_call.1} parent=5 // pred_check_branch
        %179 = sbr.rel (%p177) target = $region28
      $region27: #{tpu_custom_call.1} parent=5 // pred_region
        // Predicated region
        $region29: #{tpu_custom_call.1} parent=27 // pred_check
          %p180 = pneg %p37
        $region30: #{tpu_custom_call.1} parent=27 // pred_check_branch
          %182 = sbr.rel (%p180) target = $region32
        $region31: #{tpu_custom_call.1} parent=27 // pred_region
          %s183 = sand.u32 %s27, 1
          %s184 = scalar_lea.sflag [#allocation3], %s183
          %s185 = sand.u32 %s27, 1
          %s186 = smul.addr %s185, 8
          %s187 = scalar_lea.vmem [#allocation2], %s186
          %s189 = ssub.s32 128, 128
          %190 = vsyncadd %s184, %s189
          %s191 = smul.addr %s17, 128
          %s192 = scalar_lea.hbm %s0, %s191
          %s194 = sshll.u32 %s187, 4
          %s195 = int_to_ptr.vmem [resolvable:$true] %s194
          %197 = dma.hbm_to_vmem [thread:$0]  %s192, 128, %s195, %s184
        $region32: #{tpu_custom_call.1} parent=27 // pred_fallthru
          _
      $region28: #{tpu_custom_call.1} parent=5 // pred_fallthru
        _
      %p198 = scmp.le.s32.totalorder 1, %s17
      %p199 = scmp.lt.s32.totalorder %s17, 3
      %p200 = pnand %p198, %p199
      %p201 = pneg %p200
      // Predicated region
      $region33: #{tpu_custom_call.1} parent=5 // pred_check
        _
      $region34: #{tpu_custom_call.1} parent=5 // pred_check_branch
        %203 = sbr.rel (%p200) target = $region36
      $region35: #{tpu_custom_call.1} parent=5 // pred_region
        %s204 = ssub.s32 %s17, 1
        %s205 = sand.u32 %s30, 1
        %s206 = scalar_lea.sflag [#allocation3], %s205
        %s207 = sand.u32 %s30, 1
        %s208 = smul.addr %s207, 8
        %s209 = scalar_lea.vmem [#allocation2], %s208
        // Predicated region
        $region37: #{tpu_custom_call.1} parent=35 // pred_check
          %p210 = pneg %p43
        $region38: #{tpu_custom_call.1} parent=35 // pred_check_branch
          %212 = sbr.rel (%p210) target = $region40
        $region39: #{tpu_custom_call.1} parent=35 // pred_region
          %213 = dma.done %s206, 128
        $region40: #{tpu_custom_call.1} parent=35 // pred_fallthru
          _
        // Predicated region
        $region41: #{tpu_custom_call.1} parent=35 // pred_check
          %p214 = pneg %p64
        $region42: #{tpu_custom_call.1} parent=35 // pred_check_branch
          %216 = sbr.rel (%p214) target = $region44
        $region43: #{tpu_custom_call.1} parent=35 // pred_region
          %217 = dma.done [#allocation6], 512
        $region44: #{tpu_custom_call.1} parent=35 // pred_fallthru
          _
        // Predicated region
        $region45: #{tpu_custom_call.1} parent=35 // pred_check
          %p218 = pneg %p85
        $region46: #{tpu_custom_call.1} parent=35 // pred_check_branch
          %220 = sbr.rel (%p218) target = $region48
        $region47: #{tpu_custom_call.1} parent=35 // pred_region
          %221 = dma.done [#allocation6], 512
        $region48: #{tpu_custom_call.1} parent=35 // pred_fallthru
          _
        %s222 = sand.u32 %s30, 1
        %s223 = scalar_lea.sflag [#allocation3], %s222
        %s224 = sand.u32 %s30, 1
        %s225 = smul.addr %s224, 8
        %s226 = scalar_lea.vmem [#allocation2], %s225
        %p227 = pneg %p43
        %p228 = pneg %p40
        %p229 = pneg %p64
        %p230 = pneg %p61
        %p231 = pneg %p85
        %p232 = pneg %p82
        %p233 = pneg %p106
        %p234 = pneg %p103
        %p235 = pneg %p132
        %p236 = pneg %p129
        %s237 = sand.u32 %s119, 1
        %s238 = scalar_lea.sflag [#allocation4], %s237
        %s239 = sand.u32 %s119, 1
        %s240 = smul.addr %s239, 8
        %s241 = scalar_lea.vmem [#allocation8], %s240
        %v242 = vld [vmem:[%s209] sm:$0xff]
        %v243 = vld [vmem:[#allocation5] sm:$0xff]
        %v244 = vld [vmem:[#allocation5 + $0x8] sm:$0xff]
        %v245 = vld [vmem:[#allocation5 + $0x10] sm:$0xff]
        %v246 = vld [vmem:[#allocation5 + $0x18] sm:$0xff]
        %vm247 = vcmask 261120
        %v249 = vsel %vm247, %v242, 0
        %251 = vmatprep.subr.mxu0 0.0
        %252 = vmatpush1.msra.mxu0 %v243
        %253 = vmatprep.subr.mxu0 0.0
        %254 = vmatpush1.msra.mxu0 %v244
        %255 = vmatprep.subr.mxu0 0.0
        %256 = vmatpush1.msra.mxu0 %v245
        %257 = vmatprep.subr.mxu0 0.0
        %258 = vmatpush1.msra.mxu0 %v246
        %259 = vmatprep.subr.mxu0 0.0
        %260 = vmatpush1.msra.mxu0 0.0
        %261 = vmatprep.subr.mxu0 0.0
        %262 = vmatpush1.msra.mxu0 0.0
        %263 = vmatprep.subr.mxu0 0.0
        %264 = vmatpush1.msra.mxu0 0.0
        %265 = vmatprep.subr.mxu0 0.0
        %266 = vmatpush1.msra.mxu0 0.0
        %267 = vmatprep.subr.mxu0 0.0
        %268 = vmatpush1.msra.mxu0 0.0
        %269 = vmatprep.subr.mxu0 0.0
        %270 = vmatpush1.msra.mxu0 0.0
        %271 = vmatprep.subr.mxu0 0.0
        %272 = vmatpush1.msra.mxu0 0.0
        %273 = vmatprep.subr.mxu0 0.0
        %274 = vmatpush1.msra.mxu0 0.0
        %275 = vmatprep.subr.mxu0 0.0
        %276 = vmatpush1.msra.mxu0 0.0
        %277 = vmatprep.subr.mxu0 0.0
        %278 = vmatpush1.msra.mxu0 0.0
        %279 = vmatprep.subr.mxu0 0.0
        %280 = vmatpush1.msra.mxu0 0.0
        %281 = vmatprep.subr.mxu0 0.0
        %282 = vmatpush1.msra.mxu0 0.0
        %283 = vmatprep.subr.mxu0 0.0
        %284 = vmatpush1.msra.mxu0 0.0
        %285 = vmatprep.subr.mxu0 0.0
        %286 = vmatpush1.msra.mxu0 0.0
        %287 = vmatprep.subr.mxu0 0.0
        %288 = vmatpush1.msra.mxu0 0.0
        %289 = vmatprep.subr.mxu0 0.0
        %290 = vmatpush1.msra.mxu0 0.0
        %291 = vmatprep.subr.mxu0 0.0
        %292 = vmatpush1.msra.mxu0 0.0
        %293 = vmatprep.subr.mxu0 0.0
        %294 = vmatpush1.msra.mxu0 0.0
        %295 = vmatprep.subr.mxu0 0.0
        %296 = vmatpush1.msra.mxu0 0.0
        %297 = vmatprep.subr.mxu0 0.0
        %298 = vmatpush1.msra.mxu0 0.0
        %299 = vmatprep.subr.mxu0 0.0
        %300 = vmatpush1.msra.mxu0 0.0
        %301 = vmatprep.subr.mxu0 0.0
        %302 = vmatpush1.msra.mxu0 0.0
        %303 = vmatprep.subr.mxu0 0.0
        %304 = vmatpush1.msra.mxu0 0.0
        %305 = vmatprep.subr.mxu0 0.0
        %306 = vmatpush1.msra.mxu0 0.0
        %307 = vmatprep.subr.mxu0 0.0
        %308 = vmatpush1.msra.mxu0 0.0
        %309 = vmatprep.subr.mxu0 0.0
        %310 = vmatpush1.msra.mxu0 0.0
        %311 = vmatprep.subr.mxu0 0.0
        %312 = vmatpush1.msra.mxu0 0.0
        %313 = vmatprep.subr.mxu0 0.0
        %314 = vmatpush1.msra.mxu0 0.0
        %315 = vmatprep.mubr.f32.mxu0 0.0
        %316 = vmatmul.mubr.f32.gmra.mrb[0].mxu0 %v249
        %v317 = vpop.f32.mrb[0].mxu0
        %v318 = vadd.f32 0.0, %v317
        %v319 = vpop.f32.mrb[0].mxu0
        %320 = vdwg.mxu0
        %322 = vrot.lane.b32.xlu0 %v318, 96
        %v323 = vpop.permute.xlu0 %322
        %vm324 = vcmask 31744
        %v325 = vsel %vm324, %v318, 0
        %v327 = vsel %vm324, %v323, 0
        %329 = vmatprep.subr.mxu0 0.0
        %330 = vmatpush1.xpose.msra.mxu0 %v327
        %331 = vmatprep.subr.mxu0 0.0
        %332 = vmatpush1.xpose.msra.mxu0 0.0
        %333 = vmatprep.subr.mxu0 0.0
        %334 = vmatpush1.xpose.msra.mxu0 0.0
        %335 = vmatprep.subr.mxu0 0.0
        %336 = vmatpush1.xpose.msra.mxu0 0.0
        %337 = vmatprep.subr.mxu0 0.0
        %338 = vmatpush1.xpose.msra.mxu0 0.0
        %339 = vmatprep.subr.mxu0 0.0
        %340 = vmatpush1.xpose.msra.mxu0 0.0
        %341 = vmatprep.subr.mxu0 0.0
        %342 = vmatpush1.xpose.msra.mxu0 0.0
        %343 = vmatprep.subr.mxu0 0.0
        %344 = vmatpush1.xpose.msra.mxu0 0.0
        %345 = vmatprep.subr.mxu0 0.0
        %346 = vmatpush1.xpose.msra.mxu0 0.0
        %347 = vmatprep.subr.mxu0 0.0
        %348 = vmatpush1.xpose.msra.mxu0 0.0
        %349 = vmatprep.subr.mxu0 0.0
        %350 = vmatpush1.xpose.msra.mxu0 0.0
        %351 = vmatprep.subr.mxu0 0.0
        %352 = vmatpush1.xpose.msra.mxu0 0.0
        %353 = vmatprep.subr.mxu0 0.0
        %354 = vmatpush1.xpose.msra.mxu0 0.0
        %355 = vmatprep.subr.mxu0 0.0
        %356 = vmatpush1.xpose.msra.mxu0 0.0
        %357 = vmatprep.subr.mxu0 0.0
        %358 = vmatpush1.xpose.msra.mxu0 0.0
        %359 = vmatprep.subr.mxu0 0.0
        %360 = vmatpush1.xpose.msra.mxu0 0.0
        %361 = vmatprep.subr.mxu0 0.0
        %362 = vmatpush1.xpose.msra.mxu0 0.0
        %363 = vmatprep.subr.mxu0 0.0
        %364 = vmatpush1.xpose.msra.mxu0 0.0
        %365 = vmatprep.subr.mxu0 0.0
        %366 = vmatpush1.xpose.msra.mxu0 0.0
        %367 = vmatprep.subr.mxu0 0.0
        %368 = vmatpush1.xpose.msra.mxu0 0.0
        %369 = vmatprep.subr.mxu0 0.0
        %370 = vmatpush1.xpose.msra.mxu0 0.0
        %371 = vmatprep.subr.mxu0 0.0
        %372 = vmatpush1.xpose.msra.mxu0 0.0
        %373 = vmatprep.subr.mxu0 0.0
        %374 = vmatpush1.xpose.msra.mxu0 0.0
        %375 = vmatprep.subr.mxu0 0.0
        %376 = vmatpush1.xpose.msra.mxu0 0.0
        %377 = vmatprep.subr.mxu0 0.0
        %378 = vmatpush1.xpose.msra.mxu0 0.0
        %379 = vmatprep.subr.mxu0 0.0
        %380 = vmatpush1.xpose.msra.mxu0 0.0
        %381 = vmatprep.subr.mxu0 0.0
        %382 = vmatpush1.xpose.msra.mxu0 0.0
        %383 = vmatprep.subr.mxu0 0.0
        %384 = vmatpush1.xpose.msra.mxu0 0.0
        %385 = vmatprep.subr.mxu0 0.0
        %386 = vmatpush1.xpose.msra.mxu0 0.0
        %387 = vmatprep.subr.mxu0 0.0
        %388 = vmatpush1.xpose.msra.mxu0 0.0
        %389 = vmatprep.subr.mxu0 0.0
        %390 = vmatpush1.xpose.msra.mxu0 0.0
        %391 = vmatprep.subr.mxu0 0.0
        %392 = vmatpush1.xpose.msra.mxu0 0.0
        %393 = vmatprep.mubr.f32.mxu0 0.0
        %394 = vmatmul.mubr.f32.gmra.mrb[0].mxu0 %v325
        %v395 = vpop.f32.mrb[0].mxu0
        %v396 = vadd.f32 0.0, %v395
        %v397 = vpop.f32.mrb[0].mxu0
        %398 = vdwg.mxu0
        %v399 = vmul.f32 %v396, 0.17677669
        %vm400 = vcmask 64512
        %v401 = vsel %vm400, %v399, -inf
        %402 = vmax.xlane.f32.xlu0 %v401
        %v403 = vpop.xlane.xlu0 %402
        %v404 = vsub.f32 %v399, %v403
        %v405 = vmul.f32 %v404, 1.442695
        %v406 = vpow.pop %v405
        %v407 = vsel %vm400, %v406, 0.0
        %408 = vadd.xlane.f32.xlu0 %v407
        %v409 = vpop.xlane.xlu0 %408
        %v410 = vrcp.pop %v409
        %v411 = vmul.f32 %v406, %v410
        %412 = vrot.lane.b32.xlu0 %v318, 64
        %v413 = vpop.permute.xlu0 %412
        %v416 = vsel %vm400, %v411, 0
        %418 = vmatprep.subr.mxu0 0.0
        %419 = vmatpush1.msra.mxu0 %v413
        %420 = vmatprep.subr.mxu0 0.0
        %421 = vmatpush1.msra.mxu0 0.0
        %422 = vmatprep.subr.mxu0 0.0
        %423 = vmatpush1.msra.mxu0 0.0
        %424 = vmatprep.subr.mxu0 0.0
        %425 = vmatpush1.msra.mxu0 0.0
        %426 = vmatprep.subr.mxu0 0.0
        %427 = vmatpush1.msra.mxu0 0.0
        %428 = vmatprep.subr.mxu0 0.0
        %429 = vmatpush1.msra.mxu0 0.0
        %430 = vmatprep.subr.mxu0 0.0
        %431 = vmatpush1.msra.mxu0 0.0
        %432 = vmatprep.subr.mxu0 0.0
        %433 = vmatpush1.msra.mxu0 0.0
        %434 = vmatprep.subr.mxu0 0.0
        %435 = vmatpush1.msra.mxu0 0.0
        %436 = vmatprep.subr.mxu0 0.0
        %437 = vmatpush1.msra.mxu0 0.0
        %438 = vmatprep.subr.mxu0 0.0
        %439 = vmatpush1.msra.mxu0 0.0
        %440 = vmatprep.subr.mxu0 0.0
        %441 = vmatpush1.msra.mxu0 0.0
        %442 = vmatprep.subr.mxu0 0.0
        %443 = vmatpush1.msra.mxu0 0.0
        %444 = vmatprep.subr.mxu0 0.0
        %445 = vmatpush1.msra.mxu0 0.0
        %446 = vmatprep.subr.mxu0 0.0
        %447 = vmatpush1.msra.mxu0 0.0
        %448 = vmatprep.subr.mxu0 0.0
        %449 = vmatpush1.msra.mxu0 0.0
        %450 = vmatprep.subr.mxu0 0.0
        %451 = vmatpush1.msra.mxu0 0.0
        %452 = vmatprep.subr.mxu0 0.0
        %453 = vmatpush1.msra.mxu0 0.0
        %454 = vmatprep.subr.mxu0 0.0
        %455 = vmatpush1.msra.mxu0 0.0
        %456 = vmatprep.subr.mxu0 0.0
        %457 = vmatpush1.msra.mxu0 0.0
        %458 = vmatprep.subr.mxu0 0.0
        %459 = vmatpush1.msra.mxu0 0.0
        %460 = vmatprep.subr.mxu0 0.0
        %461 = vmatpush1.msra.mxu0 0.0
        %462 = vmatprep.subr.mxu0 0.0
        %463 = vmatpush1.msra.mxu0 0.0
        %464 = vmatprep.subr.mxu0 0.0
        %465 = vmatpush1.msra.mxu0 0.0
        %466 = vmatprep.subr.mxu0 0.0
        %467 = vmatpush1.msra.mxu0 0.0
        %468 = vmatprep.subr.mxu0 0.0
        %469 = vmatpush1.msra.mxu0 0.0
        %470 = vmatprep.subr.mxu0 0.0
        %471 = vmatpush1.msra.mxu0 0.0
        %472 = vmatprep.subr.mxu0 0.0
        %473 = vmatpush1.msra.mxu0 0.0
        %474 = vmatprep.subr.mxu0 0.0
        %475 = vmatpush1.msra.mxu0 0.0
        %476 = vmatprep.subr.mxu0 0.0
        %477 = vmatpush1.msra.mxu0 0.0
        %478 = vmatprep.subr.mxu0 0.0
        %479 = vmatpush1.msra.mxu0 0.0
        %480 = vmatprep.subr.mxu0 0.0
        %481 = vmatpush1.msra.mxu0 0.0
        %482 = vmatprep.mubr.f32.mxu0 0.0
        %483 = vmatmul.mubr.f32.gmra.mrb[0].mxu0 %v416
        %v484 = vpop.f32.mrb[0].mxu0
        %v485 = vadd.f32 0.0, %v484
        %v486 = vpop.f32.mrb[0].mxu0
        %487 = vdwg.mxu0
        %488 = vrot.lane.b32.xlu0 %v318, 124
        %v489 = vpop.permute.xlu0 %488
        %490 = vrot.lane.b32.xlu0 %v318, 92
        %v491 = vpop.permute.xlu0 %490
        %v492 = vsel %vm324, %v489, 0
        %v494 = vsel %vm324, %v491, 0
        %496 = vmatprep.subr.mxu0 0.0
        %497 = vmatpush1.xpose.msra.mxu0 %v494
        %498 = vmatprep.subr.mxu0 0.0
        %499 = vmatpush1.xpose.msra.mxu0 0.0
        %500 = vmatprep.subr.mxu0 0.0
        %501 = vmatpush1.xpose.msra.mxu0 0.0
        %502 = vmatprep.subr.mxu0 0.0
        %503 = vmatpush1.xpose.msra.mxu0 0.0
        %504 = vmatprep.subr.mxu0 0.0
        %505 = vmatpush1.xpose.msra.mxu0 0.0
        %506 = vmatprep.subr.mxu0 0.0
        %507 = vmatpush1.xpose.msra.mxu0 0.0
        %508 = vmatprep.subr.mxu0 0.0
        %509 = vmatpush1.xpose.msra.mxu0 0.0
        %510 = vmatprep.subr.mxu0 0.0
        %511 = vmatpush1.xpose.msra.mxu0 0.0
        %512 = vmatprep.subr.mxu0 0.0
        %513 = vmatpush1.xpose.msra.mxu0 0.0
        %514 = vmatprep.subr.mxu0 0.0
        %515 = vmatpush1.xpose.msra.mxu0 0.0
        %516 = vmatprep.subr.mxu0 0.0
        %517 = vmatpush1.xpose.msra.mxu0 0.0
        %518 = vmatprep.subr.mxu0 0.0
        %519 = vmatpush1.xpose.msra.mxu0 0.0
        %520 = vmatprep.subr.mxu0 0.0
        %521 = vmatpush1.xpose.msra.mxu0 0.0
        %522 = vmatprep.subr.mxu0 0.0
        %523 = vmatpush1.xpose.msra.mxu0 0.0
        %524 = vmatprep.subr.mxu0 0.0
        %525 = vmatpush1.xpose.msra.mxu0 0.0
        %526 = vmatprep.subr.mxu0 0.0
        %527 = vmatpush1.xpose.msra.mxu0 0.0
        %528 = vmatprep.subr.mxu0 0.0
        %529 = vmatpush1.xpose.msra.mxu0 0.0
        %530 = vmatprep.subr.mxu0 0.0
        %531 = vmatpush1.xpose.msra.mxu0 0.0
        %532 = vmatprep.subr.mxu0 0.0
        %533 = vmatpush1.xpose.msra.mxu0 0.0
        %534 = vmatprep.subr.mxu0 0.0
        %535 = vmatpush1.xpose.msra.mxu0 0.0
        %536 = vmatprep.subr.mxu0 0.0
        %537 = vmatpush1.xpose.msra.mxu0 0.0
        %538 = vmatprep.subr.mxu0 0.0
        %539 = vmatpush1.xpose.msra.mxu0 0.0
        %540 = vmatprep.subr.mxu0 0.0
        %541 = vmatpush1.xpose.msra.mxu0 0.0
        %542 = vmatprep.subr.mxu0 0.0
        %543 = vmatpush1.xpose.msra.mxu0 0.0
        %544 = vmatprep.subr.mxu0 0.0
        %545 = vmatpush1.xpose.msra.mxu0 0.0
        %546 = vmatprep.subr.mxu0 0.0
        %547 = vmatpush1.xpose.msra.mxu0 0.0
        %548 = vmatprep.subr.mxu0 0.0
        %549 = vmatpush1.xpose.msra.mxu0 0.0
        %550 = vmatprep.subr.mxu0 0.0
        %551 = vmatpush1.xpose.msra.mxu0 0.0
        %552 = vmatprep.subr.mxu0 0.0
        %553 = vmatpush1.xpose.msra.mxu0 0.0
        %554 = vmatprep.subr.mxu0 0.0
        %555 = vmatpush1.xpose.msra.mxu0 0.0
        %556 = vmatprep.subr.mxu0 0.0
        %557 = vmatpush1.xpose.msra.mxu0 0.0
        %558 = vmatprep.subr.mxu0 0.0
        %559 = vmatpush1.xpose.msra.mxu0 0.0
        %560 = vmatprep.mubr.f32.mxu0 0.0
        %561 = vmatmul.mubr.f32.gmra.mrb[0].mxu0 %v492
        %v562 = vpop.f32.mrb[0].mxu0
        %v563 = vadd.f32 0.0, %v562
        %v564 = vpop.f32.mrb[0].mxu0
        %565 = vdwg.mxu0
        %v566 = vmul.f32 %v563, 0.17677669
        %v567 = vsel %vm400, %v566, -inf
        %568 = vmax.xlane.f32.xlu0 %v567
        %v569 = vpop.xlane.xlu0 %568
        %v570 = vsub.f32 %v566, %v569
        %v571 = vmul.f32 %v570, 1.442695
        %v572 = vpow.pop %v571
        %v573 = vsel %vm400, %v572, 0.0
        %574 = vadd.xlane.f32.xlu0 %v573
        %v575 = vpop.xlane.xlu0 %574
        %v576 = vrcp.pop %v575
        %v577 = vmul.f32 %v572, %v576
        %578 = vrot.lane.b32.xlu0 %v318, 60
        %v579 = vpop.permute.xlu0 %578
        %v582 = vsel %vm400, %v577, 0
        %584 = vmatprep.subr.mxu0 0.0
        %585 = vmatpush1.msra.mxu0 %v579
        %586 = vmatprep.subr.mxu0 0.0
        %587 = vmatpush1.msra.mxu0 0.0
        %588 = vmatprep.subr.mxu0 0.0
        %589 = vmatpush1.msra.mxu0 0.0
        %590 = vmatprep.subr.mxu0 0.0
        %591 = vmatpush1.msra.mxu0 0.0
        %592 = vmatprep.subr.mxu0 0.0
        %593 = vmatpush1.msra.mxu0 0.0
        %594 = vmatprep.subr.mxu0 0.0
        %595 = vmatpush1.msra.mxu0 0.0
        %596 = vmatprep.subr.mxu0 0.0
        %597 = vmatpush1.msra.mxu0 0.0
        %598 = vmatprep.subr.mxu0 0.0
        %599 = vmatpush1.msra.mxu0 0.0
        %600 = vmatprep.subr.mxu0 0.0
        %601 = vmatpush1.msra.mxu0 0.0
        %602 = vmatprep.subr.mxu0 0.0
        %603 = vmatpush1.msra.mxu0 0.0
        %604 = vmatprep.subr.mxu0 0.0
        %605 = vmatpush1.msra.mxu0 0.0
        %606 = vmatprep.subr.mxu0 0.0
        %607 = vmatpush1.msra.mxu0 0.0
        %608 = vmatprep.subr.mxu0 0.0
        %609 = vmatpush1.msra.mxu0 0.0
        %610 = vmatprep.subr.mxu0 0.0
        %611 = vmatpush1.msra.mxu0 0.0
        %612 = vmatprep.subr.mxu0 0.0
        %613 = vmatpush1.msra.mxu0 0.0
        %614 = vmatprep.subr.mxu0 0.0
        %615 = vmatpush1.msra.mxu0 0.0
        %616 = vmatprep.subr.mxu0 0.0
        %617 = vmatpush1.msra.mxu0 0.0
        %618 = vmatprep.subr.mxu0 0.0
        %619 = vmatpush1.msra.mxu0 0.0
        %620 = vmatprep.subr.mxu0 0.0
        %621 = vmatpush1.msra.mxu0 0.0
        %622 = vmatprep.subr.mxu0 0.0
        %623 = vmatpush1.msra.mxu0 0.0
        %624 = vmatprep.subr.mxu0 0.0
        %625 = vmatpush1.msra.mxu0 0.0
        %626 = vmatprep.subr.mxu0 0.0
        %627 = vmatpush1.msra.mxu0 0.0
        %628 = vmatprep.subr.mxu0 0.0
        %629 = vmatpush1.msra.mxu0 0.0
        %630 = vmatprep.subr.mxu0 0.0
        %631 = vmatpush1.msra.mxu0 0.0
        %632 = vmatprep.subr.mxu0 0.0
        %633 = vmatpush1.msra.mxu0 0.0
        %634 = vmatprep.subr.mxu0 0.0
        %635 = vmatpush1.msra.mxu0 0.0
        %636 = vmatprep.subr.mxu0 0.0
        %637 = vmatpush1.msra.mxu0 0.0
        %638 = vmatprep.subr.mxu0 0.0
        %639 = vmatpush1.msra.mxu0 0.0
        %640 = vmatprep.subr.mxu0 0.0
        %641 = vmatpush1.msra.mxu0 0.0
        %642 = vmatprep.subr.mxu0 0.0
        %643 = vmatpush1.msra.mxu0 0.0
        %644 = vmatprep.subr.mxu0 0.0
        %645 = vmatpush1.msra.mxu0 0.0
        %646 = vmatprep.subr.mxu0 0.0
        %647 = vmatpush1.msra.mxu0 0.0
        %648 = vmatprep.mubr.f32.mxu0 0.0
        %649 = vmatmul.mubr.f32.gmra.mrb[0].mxu0 %v582
        %v650 = vpop.f32.mrb[0].mxu0
        %v651 = vadd.f32 0.0, %v650
        %v652 = vpop.f32.mrb[0].mxu0
        %653 = vdwg.mxu0
        %654 = vrot.lane.b32.xlu0 %v318, 120
        %v655 = vpop.permute.xlu0 %654
        %656 = vrot.lane.b32.xlu0 %v318, 88
        %v657 = vpop.permute.xlu0 %656
        %v658 = vsel %vm324, %v655, 0
        %v660 = vsel %vm324, %v657, 0
        %662 = vmatprep.subr.mxu0 0.0
        %663 = vmatpush1.xpose.msra.mxu0 %v660
        %664 = vmatprep.subr.mxu0 0.0
        %665 = vmatpush1.xpose.msra.mxu0 0.0
        %666 = vmatprep.subr.mxu0 0.0
        %667 = vmatpush1.xpose.msra.mxu0 0.0
        %668 = vmatprep.subr.mxu0 0.0
        %669 = vmatpush1.xpose.msra.mxu0 0.0
        %670 = vmatprep.subr.mxu0 0.0
        %671 = vmatpush1.xpose.msra.mxu0 0.0
        %672 = vmatprep.subr.mxu0 0.0
        %673 = vmatpush1.xpose.msra.mxu0 0.0
        %674 = vmatprep.subr.mxu0 0.0
        %675 = vmatpush1.xpose.msra.mxu0 0.0
        %676 = vmatprep.subr.mxu0 0.0
        %677 = vmatpush1.xpose.msra.mxu0 0.0
        %678 = vmatprep.subr.mxu0 0.0
        %679 = vmatpush1.xpose.msra.mxu0 0.0
        %680 = vmatprep.subr.mxu0 0.0
        %681 = vmatpush1.xpose.msra.mxu0 0.0
        %682 = vmatprep.subr.mxu0 0.0
        %683 = vmatpush1.xpose.msra.mxu0 0.0
        %684 = vmatprep.subr.mxu0 0.0
        %685 = vmatpush1.xpose.msra.mxu0 0.0
        %686 = vmatprep.subr.mxu0 0.0
        %687 = vmatpush1.xpose.msra.mxu0 0.0
        %688 = vmatprep.subr.mxu0 0.0
        %689 = vmatpush1.xpose.msra.mxu0 0.0
        %690 = vmatprep.subr.mxu0 0.0
        %691 = vmatpush1.xpose.msra.mxu0 0.0
        %692 = vmatprep.subr.mxu0 0.0
        %693 = vmatpush1.xpose.msra.mxu0 0.0
        %694 = vmatprep.subr.mxu0 0.0
        %695 = vmatpush1.xpose.msra.mxu0 0.0
        %696 = vmatprep.subr.mxu0 0.0
        %697 = vmatpush1.xpose.msra.mxu0 0.0
        %698 = vmatprep.subr.mxu0 0.0
        %699 = vmatpush1.xpose.msra.mxu0 0.0
        %700 = vmatprep.subr.mxu0 0.0
        %701 = vmatpush1.xpose.msra.mxu0 0.0
        %702 = vmatprep.subr.mxu0 0.0
        %703 = vmatpush1.xpose.msra.mxu0 0.0
        %704 = vmatprep.subr.mxu0 0.0
        %705 = vmatpush1.xpose.msra.mxu0 0.0
        %706 = vmatprep.subr.mxu0 0.0
        %707 = vmatpush1.xpose.msra.mxu0 0.0
        %708 = vmatprep.subr.mxu0 0.0
        %709 = vmatpush1.xpose.msra.mxu0 0.0
        %710 = vmatprep.subr.mxu0 0.0
        %711 = vmatpush1.xpose.msra.mxu0 0.0
        %712 = vmatprep.subr.mxu0 0.0
        %713 = vmatpush1.xpose.msra.mxu0 0.0
        %714 = vmatprep.subr.mxu0 0.0
        %715 = vmatpush1.xpose.msra.mxu0 0.0
        %716 = vmatprep.subr.mxu0 0.0
        %717 = vmatpush1.xpose.msra.mxu0 0.0
        %718 = vmatprep.subr.mxu0 0.0
        %719 = vmatpush1.xpose.msra.mxu0 0.0
        %720 = vmatprep.subr.mxu0 0.0
        %721 = vmatpush1.xpose.msra.mxu0 0.0
        %722 = vmatprep.subr.mxu0 0.0
        %723 = vmatpush1.xpose.msra.mxu0 0.0
        %724 = vmatprep.subr.mxu0 0.0
        %725 = vmatpush1.xpose.msra.mxu0 0.0
        %726 = vmatprep.mubr.f32.mxu0 0.0
        %727 = vmatmul.mubr.f32.gmra.mrb[0].mxu0 %v658
        %v728 = vpop.f32.mrb[0].mxu0
        %v729 = vadd.f32 0.0, %v728
        %v730 = vpop.f32.mrb[0].mxu0
        %731 = vdwg.mxu0
        %v732 = vmul.f32 %v729, 0.17677669
        %v733 = vsel %vm400, %v732, -inf
        %734 = vmax.xlane.f32.xlu0 %v733
        %v735 = vpop.xlane.xlu0 %734
        %v736 = vsub.f32 %v732, %v735
        %v737 = vmul.f32 %v736, 1.442695
        %v738 = vpow.pop %v737
        %v739 = vsel %vm400, %v738, 0.0
        %740 = vadd.xlane.f32.xlu0 %v739
        %v741 = vpop.xlane.xlu0 %740
        %v742 = vrcp.pop %v741
        %v743 = vmul.f32 %v738, %v742
        %744 = vrot.lane.b32.xlu0 %v318, 56
        %v745 = vpop.permute.xlu0 %744
        %v748 = vsel %vm400, %v743, 0
        %750 = vmatprep.subr.mxu0 0.0
        %751 = vmatpush1.msra.mxu0 %v745
        %752 = vmatprep.subr.mxu0 0.0
        %753 = vmatpush1.msra.mxu0 0.0
        %754 = vmatprep.subr.mxu0 0.0
        %755 = vmatpush1.msra.mxu0 0.0
        %756 = vmatprep.subr.mxu0 0.0
        %757 = vmatpush1.msra.mxu0 0.0
        %758 = vmatprep.subr.mxu0 0.0
        %759 = vmatpush1.msra.mxu0 0.0
        %760 = vmatprep.subr.mxu0 0.0
        %761 = vmatpush1.msra.mxu0 0.0
        %762 = vmatprep.subr.mxu0 0.0
        %763 = vmatpush1.msra.mxu0 0.0
        %764 = vmatprep.subr.mxu0 0.0
        %765 = vmatpush1.msra.mxu0 0.0
        %766 = vmatprep.subr.mxu0 0.0
        %767 = vmatpush1.msra.mxu0 0.0
        %768 = vmatprep.subr.mxu0 0.0
        %769 = vmatpush1.msra.mxu0 0.0
        %770 = vmatprep.subr.mxu0 0.0
        %771 = vmatpush1.msra.mxu0 0.0
        %772 = vmatprep.subr.mxu0 0.0
        %773 = vmatpush1.msra.mxu0 0.0
        %774 = vmatprep.subr.mxu0 0.0
        %775 = vmatpush1.msra.mxu0 0.0
        %776 = vmatprep.subr.mxu0 0.0
        %777 = vmatpush1.msra.mxu0 0.0
        %778 = vmatprep.subr.mxu0 0.0
        %779 = vmatpush1.msra.mxu0 0.0
        %780 = vmatprep.subr.mxu0 0.0
        %781 = vmatpush1.msra.mxu0 0.0
        %782 = vmatprep.subr.mxu0 0.0
        %783 = vmatpush1.msra.mxu0 0.0
        %784 = vmatprep.subr.mxu0 0.0
        %785 = vmatpush1.msra.mxu0 0.0
        %786 = vmatprep.subr.mxu0 0.0
        %787 = vmatpush1.msra.mxu0 0.0
        %788 = vmatprep.subr.mxu0 0.0
        %789 = vmatpush1.msra.mxu0 0.0
        %790 = vmatprep.subr.mxu0 0.0
        %791 = vmatpush1.msra.mxu0 0.0
        %792 = vmatprep.subr.mxu0 0.0
        %793 = vmatpush1.msra.mxu0 0.0
        %794 = vmatprep.subr.mxu0 0.0
        %795 = vmatpush1.msra.mxu0 0.0
        %796 = vmatprep.subr.mxu0 0.0
        %797 = vmatpush1.msra.mxu0 0.0
        %798 = vmatprep.subr.mxu0 0.0
        %799 = vmatpush1.msra.mxu0 0.0
        %800 = vmatprep.subr.mxu0 0.0
        %801 = vmatpush1.msra.mxu0 0.0
        %802 = vmatprep.subr.mxu0 0.0
        %803 = vmatpush1.msra.mxu0 0.0
        %804 = vmatprep.subr.mxu0 0.0
        %805 = vmatpush1.msra.mxu0 0.0
        %806 = vmatprep.subr.mxu0 0.0
        %807 = vmatpush1.msra.mxu0 0.0
        %808 = vmatprep.subr.mxu0 0.0
        %809 = vmatpush1.msra.mxu0 0.0
        %810 = vmatprep.subr.mxu0 0.0
        %811 = vmatpush1.msra.mxu0 0.0
        %812 = vmatprep.subr.mxu0 0.0
        %813 = vmatpush1.msra.mxu0 0.0
        %814 = vmatprep.mubr.f32.mxu0 0.0
        %815 = vmatmul.mubr.f32.gmra.mrb[0].mxu0 %v748
        %v816 = vpop.f32.mrb[0].mxu0
        %v817 = vadd.f32 0.0, %v816
        %v818 = vpop.f32.mrb[0].mxu0
        %819 = vdwg.mxu0
        %820 = vrot.lane.b32.xlu0 %v318, 116
        %v821 = vpop.permute.xlu0 %820
        %822 = vrot.lane.b32.xlu0 %v318, 84
        %v823 = vpop.permute.xlu0 %822
        %v824 = vsel %vm324, %v821, 0
        %v826 = vsel %vm324, %v823, 0
        %828 = vmatprep.subr.mxu0 0.0
        %829 = vmatpush1.xpose.msra.mxu0 %v826
        %830 = vmatprep.subr.mxu0 0.0
        %831 = vmatpush1.xpose.msra.mxu0 0.0
        %832 = vmatprep.subr.mxu0 0.0
        %833 = vmatpush1.xpose.msra.mxu0 0.0
        %834 = vmatprep.subr.mxu0 0.0
        %835 = vmatpush1.xpose.msra.mxu0 0.0
        %836 = vmatprep.subr.mxu0 0.0
        %837 = vmatpush1.xpose.msra.mxu0 0.0
        %838 = vmatprep.subr.mxu0 0.0
        %839 = vmatpush1.xpose.msra.mxu0 0.0
        %840 = vmatprep.subr.mxu0 0.0
        %841 = vmatpush1.xpose.msra.mxu0 0.0
        %842 = vmatprep.subr.mxu0 0.0
        %843 = vmatpush1.xpose.msra.mxu0 0.0
        %844 = vmatprep.subr.mxu0 0.0
        %845 = vmatpush1.xpose.msra.mxu0 0.0
        %846 = vmatprep.subr.mxu0 0.0
        %847 = vmatpush1.xpose.msra.mxu0 0.0
        %848 = vmatprep.subr.mxu0 0.0
        %849 = vmatpush1.xpose.msra.mxu0 0.0
        %850 = vmatprep.subr.mxu0 0.0
        %851 = vmatpush1.xpose.msra.mxu0 0.0
        %852 = vmatprep.subr.mxu0 0.0
        %853 = vmatpush1.xpose.msra.mxu0 0.0
        %854 = vmatprep.subr.mxu0 0.0
        %855 = vmatpush1.xpose.msra.mxu0 0.0
        %856 = vmatprep.subr.mxu0 0.0
        %857 = vmatpush1.xpose.msra.mxu0 0.0
        %858 = vmatprep.subr.mxu0 0.0
        %859 = vmatpush1.xpose.msra.mxu0 0.0
        %860 = vmatprep.subr.mxu0 0.0
        %861 = vmatpush1.xpose.msra.mxu0 0.0
        %862 = vmatprep.subr.mxu0 0.0
        %863 = vmatpush1.xpose.msra.mxu0 0.0
        %864 = vmatprep.subr.mxu0 0.0
        %865 = vmatpush1.xpose.msra.mxu0 0.0
        %866 = vmatprep.subr.mxu0 0.0
        %867 = vmatpush1.xpose.msra.mxu0 0.0
        %868 = vmatprep.subr.mxu0 0.0
        %869 = vmatpush1.xpose.msra.mxu0 0.0
        %870 = vmatprep.subr.mxu0 0.0
        %871 = vmatpush1.xpose.msra.mxu0 0.0
        %872 = vmatprep.subr.mxu0 0.0
        %873 = vmatpush1.xpose.msra.mxu0 0.0
        %874 = vmatprep.subr.mxu0 0.0
        %875 = vmatpush1.xpose.msra.mxu0 0.0
        %876 = vmatprep.subr.mxu0 0.0
        %877 = vmatpush1.xpose.msra.mxu0 0.0
        %878 = vmatprep.subr.mxu0 0.0
        %879 = vmatpush1.xpose.msra.mxu0 0.0
        %880 = vmatprep.subr.mxu0 0.0
        %881 = vmatpush1.xpose.msra.mxu0 0.0
        %882 = vmatprep.subr.mxu0 0.0
        %883 = vmatpush1.xpose.msra.mxu0 0.0
        %884 = vmatprep.subr.mxu0 0.0
        %885 = vmatpush1.xpose.msra.mxu0 0.0
        %886 = vmatprep.subr.mxu0 0.0
        %887 = vmatpush1.xpose.msra.mxu0 0.0
        %888 = vmatprep.subr.mxu0 0.0
        %889 = vmatpush1.xpose.msra.mxu0 0.0
        %890 = vmatprep.subr.mxu0 0.0
        %891 = vmatpush1.xpose.msra.mxu0 0.0
        %892 = vmatprep.mubr.f32.mxu0 0.0
        %893 = vmatmul.mubr.f32.gmra.mrb[0].mxu0 %v824
        %v894 = vpop.f32.mrb[0].mxu0
        %v895 = vadd.f32 0.0, %v894
        %v896 = vpop.f32.mrb[0].mxu0
        %897 = vdwg.mxu0
        %v898 = vmul.f32 %v895, 0.17677669
        %v899 = vsel %vm400, %v898, -inf
        %900 = vmax.xlane.f32.xlu0 %v899
        %v901 = vpop.xlane.xlu0 %900
        %v902 = vsub.f32 %v898, %v901
        %v903 = vmul.f32 %v902, 1.442695
        %v904 = vpow.pop %v903
        %v905 = vsel %vm400, %v904, 0.0
        %906 = vadd.xlane.f32.xlu0 %v905
        %v907 = vpop.xlane.xlu0 %906
        %v908 = vrcp.pop %v907
        %v909 = vmul.f32 %v904, %v908
        %910 = vrot.lane.b32.xlu0 %v318, 52
        %v911 = vpop.permute.xlu0 %910
        %v914 = vsel %vm400, %v909, 0
        %916 = vmatprep.subr.mxu0 0.0
        %917 = vmatpush1.msra.mxu0 %v911
        %918 = vmatprep.subr.mxu0 0.0
        %919 = vmatpush1.msra.mxu0 0.0
        %920 = vmatprep.subr.mxu0 0.0
        %921 = vmatpush1.msra.mxu0 0.0
        %922 = vmatprep.subr.mxu0 0.0
        %923 = vmatpush1.msra.mxu0 0.0
        %924 = vmatprep.subr.mxu0 0.0
        %925 = vmatpush1.msra.mxu0 0.0
        %926 = vmatprep.subr.mxu0 0.0
        %927 = vmatpush1.msra.mxu0 0.0
        %928 = vmatprep.subr.mxu0 0.0
        %929 = vmatpush1.msra.mxu0 0.0
        %930 = vmatprep.subr.mxu0 0.0
        %931 = vmatpush1.msra.mxu0 0.0
        %932 = vmatprep.subr.mxu0 0.0
        %933 = vmatpush1.msra.mxu0 0.0
        %934 = vmatprep.subr.mxu0 0.0
        %935 = vmatpush1.msra.mxu0 0.0
        %936 = vmatprep.subr.mxu0 0.0
        %937 = vmatpush1.msra.mxu0 0.0
        %938 = vmatprep.subr.mxu0 0.0
        %939 = vmatpush1.msra.mxu0 0.0
        %940 = vmatprep.subr.mxu0 0.0
        %941 = vmatpush1.msra.mxu0 0.0
        %942 = vmatprep.subr.mxu0 0.0
        %943 = vmatpush1.msra.mxu0 0.0
        %944 = vmatprep.subr.mxu0 0.0
        %945 = vmatpush1.msra.mxu0 0.0
        %946 = vmatprep.subr.mxu0 0.0
        %947 = vmatpush1.msra.mxu0 0.0
        %948 = vmatprep.subr.mxu0 0.0
        %949 = vmatpush1.msra.mxu0 0.0
        %950 = vmatprep.subr.mxu0 0.0
        %951 = vmatpush1.msra.mxu0 0.0
        %952 = vmatprep.subr.mxu0 0.0
        %953 = vmatpush1.msra.mxu0 0.0
        %954 = vmatprep.subr.mxu0 0.0
        %955 = vmatpush1.msra.mxu0 0.0
        %956 = vmatprep.subr.mxu0 0.0
        %957 = vmatpush1.msra.mxu0 0.0
        %958 = vmatprep.subr.mxu0 0.0
        %959 = vmatpush1.msra.mxu0 0.0
        %960 = vmatprep.subr.mxu0 0.0
        %961 = vmatpush1.msra.mxu0 0.0
        %962 = vmatprep.subr.mxu0 0.0
        %963 = vmatpush1.msra.mxu0 0.0
        %964 = vmatprep.subr.mxu0 0.0
        %965 = vmatpush1.msra.mxu0 0.0
        %966 = vmatprep.subr.mxu0 0.0
        %967 = vmatpush1.msra.mxu0 0.0
        %968 = vmatprep.subr.mxu0 0.0
        %969 = vmatpush1.msra.mxu0 0.0
        %970 = vmatprep.subr.mxu0 0.0
        %971 = vmatpush1.msra.mxu0 0.0
        %972 = vmatprep.subr.mxu0 0.0
        %973 = vmatpush1.msra.mxu0 0.0
        %974 = vmatprep.subr.mxu0 0.0
        %975 = vmatpush1.msra.mxu0 0.0
        %976 = vmatprep.subr.mxu0 0.0
        %977 = vmatpush1.msra.mxu0 0.0
        %978 = vmatprep.subr.mxu0 0.0
        %979 = vmatpush1.msra.mxu0 0.0
        %980 = vmatprep.mubr.f32.mxu0 0.0
        %981 = vmatmul.mubr.f32.gmra.mrb[0].mxu0 %v914
        %v982 = vpop.f32.mrb[0].mxu0
        %v983 = vadd.f32 0.0, %v982
        %v984 = vpop.f32.mrb[0].mxu0
        %985 = vdwg.mxu0
        %986 = vrot.lane.b32.xlu0 %v318, 112
        %v987 = vpop.permute.xlu0 %986
        %988 = vrot.lane.b32.xlu0 %v318, 80
        %v989 = vpop.permute.xlu0 %988
        %v990 = vsel %vm324, %v987, 0
        %v992 = vsel %vm324, %v989, 0
        %994 = vmatprep.subr.mxu0 0.0
        %995 = vmatpush1.xpose.msra.mxu0 %v992
        %996 = vmatprep.subr.mxu0 0.0
        %997 = vmatpush1.xpose.msra.mxu0 0.0
        %998 = vmatprep.subr.mxu0 0.0
        %999 = vmatpush1.xpose.msra.mxu0 0.0
        %1000 = vmatprep.subr.mxu0 0.0
        %1001 = vmatpush1.xpose.msra.mxu0 0.0
        %1002 = vmatprep.subr.mxu0 0.0
        %1003 = vmatpush1.xpose.msra.mxu0 0.0
        %1004 = vmatprep.subr.mxu0 0.0
        %1005 = vmatpush1.xpose.msra.mxu0 0.0
        %1006 = vmatprep.subr.mxu0 0.0
        %1007 = vmatpush1.xpose.msra.mxu0 0.0
        %1008 = vmatprep.subr.mxu0 0.0
        %1009 = vmatpush1.xpose.msra.mxu0 0.0
        %1010 = vmatprep.subr.mxu0 0.0
        %1011 = vmatpush1.xpose.msra.mxu0 0.0
        %1012 = vmatprep.subr.mxu0 0.0
        %1013 = vmatpush1.xpose.msra.mxu0 0.0
        %1014 = vmatprep.subr.mxu0 0.0
        %1015 = vmatpush1.xpose.msra.mxu0 0.0
        %1016 = vmatprep.subr.mxu0 0.0
        %1017 = vmatpush1.xpose.msra.mxu0 0.0
        %1018 = vmatprep.subr.mxu0 0.0
        %1019 = vmatpush1.xpose.msra.mxu0 0.0
        %1020 = vmatprep.subr.mxu0 0.0
        %1021 = vmatpush1.xpose.msra.mxu0 0.0
        %1022 = vmatprep.subr.mxu0 0.0
        %1023 = vmatpush1.xpose.msra.mxu0 0.0
        %1024 = vmatprep.subr.mxu0 0.0
        %1025 = vmatpush1.xpose.msra.mxu0 0.0
        %1026 = vmatprep.subr.mxu0 0.0
        %1027 = vmatpush1.xpose.msra.mxu0 0.0
        %1028 = vmatprep.subr.mxu0 0.0
        %1029 = vmatpush1.xpose.msra.mxu0 0.0
        %1030 = vmatprep.subr.mxu0 0.0
        %1031 = vmatpush1.xpose.msra.mxu0 0.0
        %1032 = vmatprep.subr.mxu0 0.0
        %1033 = vmatpush1.xpose.msra.mxu0 0.0
        %1034 = vmatprep.subr.mxu0 0.0
        %1035 = vmatpush1.xpose.msra.mxu0 0.0
        %1036 = vmatprep.subr.mxu0 0.0
        %1037 = vmatpush1.xpose.msra.mxu0 0.0
        %1038 = vmatprep.subr.mxu0 0.0
        %1039 = vmatpush1.xpose.msra.mxu0 0.0
        %1040 = vmatprep.subr.mxu0 0.0
        %1041 = vmatpush1.xpose.msra.mxu0 0.0
        %1042 = vmatprep.subr.mxu0 0.0
        %1043 = vmatpush1.xpose.msra.mxu0 0.0
        %1044 = vmatprep.subr.mxu0 0.0
        %1045 = vmatpush1.xpose.msra.mxu0 0.0
        %1046 = vmatprep.subr.mxu0 0.0
        %1047 = vmatpush1.xpose.msra.mxu0 0.0
        %1048 = vmatprep.subr.mxu0 0.0
        %1049 = vmatpush1.xpose.msra.mxu0 0.0
        %1050 = vmatprep.subr.mxu0 0.0
        %1051 = vmatpush1.xpose.msra.mxu0 0.0
        %1052 = vmatprep.subr.mxu0 0.0
        %1053 = vmatpush1.xpose.msra.mxu0 0.0
        %1054 = vmatprep.subr.mxu0 0.0
        %1055 = vmatpush1.xpose.msra.mxu0 0.0
        %1056 = vmatprep.subr.mxu0 0.0
        %1057 = vmatpush1.xpose.msra.mxu0 0.0
        %1058 = vmatprep.mubr.f32.mxu0 0.0
        %1059 = vmatmul.mubr.f32.gmra.mrb[0].mxu0 %v990
        %v1060 = vpop.f32.mrb[0].mxu0
        %v1061 = vadd.f32 0.0, %v1060
        %v1062 = vpop.f32.mrb[0].mxu0
        %1063 = vdwg.mxu0
        %v1064 = vmul.f32 %v1061, 0.17677669
        %v1065 = vsel %vm400, %v1064, -inf
        %1066 = vmax.xlane.f32.xlu0 %v1065
        %v1067 = vpop.xlane.xlu0 %1066
        %v1068 = vsub.f32 %v1064, %v1067
        %v1069 = vmul.f32 %v1068, 1.442695
        %v1070 = vpow.pop %v1069
        %v1071 = vsel %vm400, %v1070, 0.0
        %1072 = vadd.xlane.f32.xlu0 %v1071
        %v1073 = vpop.xlane.xlu0 %1072
        %v1074 = vrcp.pop %v1073
        %v1075 = vmul.f32 %v1070, %v1074
        %1076 = vrot.lane.b32.xlu0 %v318, 48
        %v1077 = vpop.permute.xlu0 %1076
        %v1080 = vsel %vm400, %v1075, 0
        %1082 = vmatprep.subr.mxu0 0.0
        %1083 = vmatpush1.msra.mxu0 %v1077
        %1084 = vmatprep.subr.mxu0 0.0
        %1085 = vmatpush1.msra.mxu0 0.0
        %1086 = vmatprep.subr.mxu0 0.0
        %1087 = vmatpush1.msra.mxu0 0.0
        %1088 = vmatprep.subr.mxu0 0.0
        %1089 = vmatpush1.msra.mxu0 0.0
        %1090 = vmatprep.subr.mxu0 0.0
        %1091 = vmatpush1.msra.mxu0 0.0
        %1092 = vmatprep.subr.mxu0 0.0
        %1093 = vmatpush1.msra.mxu0 0.0
        %1094 = vmatprep.subr.mxu0 0.0
        %1095 = vmatpush1.msra.mxu0 0.0
        %1096 = vmatprep.subr.mxu0 0.0
        %1097 = vmatpush1.msra.mxu0 0.0
        %1098 = vmatprep.subr.mxu0 0.0
        %1099 = vmatpush1.msra.mxu0 0.0
        %1100 = vmatprep.subr.mxu0 0.0
        %1101 = vmatpush1.msra.mxu0 0.0
        %1102 = vmatprep.subr.mxu0 0.0
        %1103 = vmatpush1.msra.mxu0 0.0
        %1104 = vmatprep.subr.mxu0 0.0
        %1105 = vmatpush1.msra.mxu0 0.0
        %1106 = vmatprep.subr.mxu0 0.0
        %1107 = vmatpush1.msra.mxu0 0.0
        %1108 = vmatprep.subr.mxu0 0.0
        %1109 = vmatpush1.msra.mxu0 0.0
        %1110 = vmatprep.subr.mxu0 0.0
        %1111 = vmatpush1.msra.mxu0 0.0
        %1112 = vmatprep.subr.mxu0 0.0
        %1113 = vmatpush1.msra.mxu0 0.0
        %1114 = vmatprep.subr.mxu0 0.0
        %1115 = vmatpush1.msra.mxu0 0.0
        %1116 = vmatprep.subr.mxu0 0.0
        %1117 = vmatpush1.msra.mxu0 0.0
        %1118 = vmatprep.subr.mxu0 0.0
        %1119 = vmatpush1.msra.mxu0 0.0
        %1120 = vmatprep.subr.mxu0 0.0
        %1121 = vmatpush1.msra.mxu0 0.0
        %1122 = vmatprep.subr.mxu0 0.0
        %1123 = vmatpush1.msra.mxu0 0.0
        %1124 = vmatprep.subr.mxu0 0.0
        %1125 = vmatpush1.msra.mxu0 0.0
        %1126 = vmatprep.subr.mxu0 0.0
        %1127 = vmatpush1.msra.mxu0 0.0
        %1128 = vmatprep.subr.mxu0 0.0
        %1129 = vmatpush1.msra.mxu0 0.0
        %1130 = vmatprep.subr.mxu0 0.0
        %1131 = vmatpush1.msra.mxu0 0.0
        %1132 = vmatprep.subr.mxu0 0.0
        %1133 = vmatpush1.msra.mxu0 0.0
        %1134 = vmatprep.subr.mxu0 0.0
        %1135 = vmatpush1.msra.mxu0 0.0
        %1136 = vmatprep.subr.mxu0 0.0
        %1137 = vmatpush1.msra.mxu0 0.0
        %1138 = vmatprep.subr.mxu0 0.0
        %1139 = vmatpush1.msra.mxu0 0.0
        %1140 = vmatprep.subr.mxu0 0.0
        %1141 = vmatpush1.msra.mxu0 0.0
        %1142 = vmatprep.subr.mxu0 0.0
        %1143 = vmatpush1.msra.mxu0 0.0
        %1144 = vmatprep.subr.mxu0 0.0
        %1145 = vmatpush1.msra.mxu0 0.0
        %1146 = vmatprep.mubr.f32.mxu0 0.0
        %1147 = vmatmul.mubr.f32.gmra.mrb[0].mxu0 %v1080
        %v1148 = vpop.f32.mrb[0].mxu0
        %v1149 = vadd.f32 0.0, %v1148
        %v1150 = vpop.f32.mrb[0].mxu0
        %1151 = vdwg.mxu0
        %1152 = vrot.lane.b32.xlu0 %v318, 108
        %v1153 = vpop.permute.xlu0 %1152
        %1154 = vrot.lane.b32.xlu0 %v318, 76
        %v1155 = vpop.permute.xlu0 %1154
        %v1156 = vsel %vm324, %v1153, 0
        %v1158 = vsel %vm324, %v1155, 0
        %1160 = vmatprep.subr.mxu0 0.0
        %1161 = vmatpush1.xpose.msra.mxu0 %v1158
        %1162 = vmatprep.subr.mxu0 0.0
        %1163 = vmatpush1.xpose.msra.mxu0 0.0
        %1164 = vmatprep.subr.mxu0 0.0
        %1165 = vmatpush1.xpose.msra.mxu0 0.0
        %1166 = vmatprep.subr.mxu0 0.0
        %1167 = vmatpush1.xpose.msra.mxu0 0.0
        %1168 = vmatprep.subr.mxu0 0.0
        %1169 = vmatpush1.xpose.msra.mxu0 0.0
        %1170 = vmatprep.subr.mxu0 0.0
        %1171 = vmatpush1.xpose.msra.mxu0 0.0
        %1172 = vmatprep.subr.mxu0 0.0
        %1173 = vmatpush1.xpose.msra.mxu0 0.0
        %1174 = vmatprep.subr.mxu0 0.0
        %1175 = vmatpush1.xpose.msra.mxu0 0.0
        %1176 = vmatprep.subr.mxu0 0.0
        %1177 = vmatpush1.xpose.msra.mxu0 0.0
        %1178 = vmatprep.subr.mxu0 0.0
        %1179 = vmatpush1.xpose.msra.mxu0 0.0
        %1180 = vmatprep.subr.mxu0 0.0
        %1181 = vmatpush1.xpose.msra.mxu0 0.0
        %1182 = vmatprep.subr.mxu0 0.0
        %1183 = vmatpush1.xpose.msra.mxu0 0.0
        %1184 = vmatprep.subr.mxu0 0.0
        %1185 = vmatpush1.xpose.msra.mxu0 0.0
        %1186 = vmatprep.subr.mxu0 0.0
        %1187 = vmatpush1.xpose.msra.mxu0 0.0
        %1188 = vmatprep.subr.mxu0 0.0
        %1189 = vmatpush1.xpose.msra.mxu0 0.0
        %1190 = vmatprep.subr.mxu0 0.0
        %1191 = vmatpush1.xpose.msra.mxu0 0.0
        %1192 = vmatprep.subr.mxu0 0.0
        %1193 = vmatpush1.xpose.msra.mxu0 0.0
        %1194 = vmatprep.subr.mxu0 0.0
        %1195 = vmatpush1.xpose.msra.mxu0 0.0
        %1196 = vmatprep.subr.mxu0 0.0
        %1197 = vmatpush1.xpose.msra.mxu0 0.0
        %1198 = vmatprep.subr.mxu0 0.0
        %1199 = vmatpush1.xpose.msra.mxu0 0.0
        %1200 = vmatprep.subr.mxu0 0.0
        %1201 = vmatpush1.xpose.msra.mxu0 0.0
        %1202 = vmatprep.subr.mxu0 0.0
        %1203 = vmatpush1.xpose.msra.mxu0 0.0
        %1204 = vmatprep.subr.mxu0 0.0
        %1205 = vmatpush1.xpose.msra.mxu0 0.0
        %1206 = vmatprep.subr.mxu0 0.0
        %1207 = vmatpush1.xpose.msra.mxu0 0.0
        %1208 = vmatprep.subr.mxu0 0.0
        %1209 = vmatpush1.xpose.msra.mxu0 0.0
        %1210 = vmatprep.subr.mxu0 0.0
        %1211 = vmatpush1.xpose.msra.mxu0 0.0
        %1212 = vmatprep.subr.mxu0 0.0
        %1213 = vmatpush1.xpose.msra.mxu0 0.0
        %1214 = vmatprep.subr.mxu0 0.0
        %1215 = vmatpush1.xpose.msra.mxu0 0.0
        %1216 = vmatprep.subr.mxu0 0.0
        %1217 = vmatpush1.xpose.msra.mxu0 0.0
        %1218 = vmatprep.subr.mxu0 0.0
        %1219 = vmatpush1.xpose.msra.mxu0 0.0
        %1220 = vmatprep.subr.mxu0 0.0
        %1221 = vmatpush1.xpose.msra.mxu0 0.0
        %1222 = vmatprep.subr.mxu0 0.0
        %1223 = vmatpush1.xpose.msra.mxu0 0.0
        %1224 = vmatprep.mubr.f32.mxu0 0.0
        %1225 = vmatmul.mubr.f32.gmra.mrb[0].mxu0 %v1156
        %v1226 = vpop.f32.mrb[0].mxu0
        %v1227 = vadd.f32 0.0, %v1226
        %v1228 = vpop.f32.mrb[0].mxu0
        %1229 = vdwg.mxu0
        %v1230 = vmul.f32 %v1227, 0.17677669
        %v1231 = vsel %vm400, %v1230, -inf
        %1232 = vmax.xlane.f32.xlu0 %v1231
        %v1233 = vpop.xlane.xlu0 %1232
        %v1234 = vsub.f32 %v1230, %v1233
        %v1235 = vmul.f32 %v1234, 1.442695
        %v1236 = vpow.pop %v1235
        %v1237 = vsel %vm400, %v1236, 0.0
        %1238 = vadd.xlane.f32.xlu0 %v1237
        %v1239 = vpop.xlane.xlu0 %1238
        %v1240 = vrcp.pop %v1239
        %v1241 = vmul.f32 %v1236, %v1240
        %1242 = vrot.lane.b32.xlu0 %v318, 44
        %v1243 = vpop.permute.xlu0 %1242
        %v1246 = vsel %vm400, %v1241, 0
        %1248 = vmatprep.subr.mxu0 0.0
        %1249 = vmatpush1.msra.mxu0 %v1243
        %1250 = vmatprep.subr.mxu0 0.0
        %1251 = vmatpush1.msra.mxu0 0.0
        %1252 = vmatprep.subr.mxu0 0.0
        %1253 = vmatpush1.msra.mxu0 0.0
        %1254 = vmatprep.subr.mxu0 0.0
        %1255 = vmatpush1.msra.mxu0 0.0
        %1256 = vmatprep.subr.mxu0 0.0
        %1257 = vmatpush1.msra.mxu0 0.0
        %1258 = vmatprep.subr.mxu0 0.0
        %1259 = vmatpush1.msra.mxu0 0.0
        %1260 = vmatprep.subr.mxu0 0.0
        %1261 = vmatpush1.msra.mxu0 0.0
        %1262 = vmatprep.subr.mxu0 0.0
        %1263 = vmatpush1.msra.mxu0 0.0
        %1264 = vmatprep.subr.mxu0 0.0
        %1265 = vmatpush1.msra.mxu0 0.0
        %1266 = vmatprep.subr.mxu0 0.0
        %1267 = vmatpush1.msra.mxu0 0.0
        %1268 = vmatprep.subr.mxu0 0.0
        %1269 = vmatpush1.msra.mxu0 0.0
        %1270 = vmatprep.subr.mxu0 0.0
        %1271 = vmatpush1.msra.mxu0 0.0
        %1272 = vmatprep.subr.mxu0 0.0
        %1273 = vmatpush1.msra.mxu0 0.0
        %1274 = vmatprep.subr.mxu0 0.0
        %1275 = vmatpush1.msra.mxu0 0.0
        %1276 = vmatprep.subr.mxu0 0.0
        %1277 = vmatpush1.msra.mxu0 0.0
        %1278 = vmatprep.subr.mxu0 0.0
        %1279 = vmatpush1.msra.mxu0 0.0
        %1280 = vmatprep.subr.mxu0 0.0
        %1281 = vmatpush1.msra.mxu0 0.0
        %1282 = vmatprep.subr.mxu0 0.0
        %1283 = vmatpush1.msra.mxu0 0.0
        %1284 = vmatprep.subr.mxu0 0.0
        %1285 = vmatpush1.msra.mxu0 0.0
        %1286 = vmatprep.subr.mxu0 0.0
        %1287 = vmatpush1.msra.mxu0 0.0
        %1288 = vmatprep.subr.mxu0 0.0
        %1289 = vmatpush1.msra.mxu0 0.0
        %1290 = vmatprep.subr.mxu0 0.0
        %1291 = vmatpush1.msra.mxu0 0.0
        %1292 = vmatprep.subr.mxu0 0.0
        %1293 = vmatpush1.msra.mxu0 0.0
        %1294 = vmatprep.subr.mxu0 0.0
        %1295 = vmatpush1.msra.mxu0 0.0
        %1296 = vmatprep.subr.mxu0 0.0
        %1297 = vmatpush1.msra.mxu0 0.0
        %1298 = vmatprep.subr.mxu0 0.0
        %1299 = vmatpush1.msra.mxu0 0.0
        %1300 = vmatprep.subr.mxu0 0.0
        %1301 = vmatpush1.msra.mxu0 0.0
        %1302 = vmatprep.subr.mxu0 0.0
        %1303 = vmatpush1.msra.mxu0 0.0
        %1304 = vmatprep.subr.mxu0 0.0
        %1305 = vmatpush1.msra.mxu0 0.0
        %1306 = vmatprep.subr.mxu0 0.0
        %1307 = vmatpush1.msra.mxu0 0.0
        %1308 = vmatprep.subr.mxu0 0.0
        %1309 = vmatpush1.msra.mxu0 0.0
        %1310 = vmatprep.subr.mxu0 0.0
        %1311 = vmatpush1.msra.mxu0 0.0
        %1312 = vmatprep.mubr.f32.mxu0 0.0
        %1313 = vmatmul.mubr.f32.gmra.mrb[0].mxu0 %v1246
        %v1314 = vpop.f32.mrb[0].mxu0
        %v1315 = vadd.f32 0.0, %v1314
        %v1316 = vpop.f32.mrb[0].mxu0
        %1317 = vdwg.mxu0
        %1318 = vrot.lane.b32.xlu0 %v318, 104
        %v1319 = vpop.permute.xlu0 %1318
        %1320 = vrot.lane.b32.xlu0 %v318, 72
        %v1321 = vpop.permute.xlu0 %1320
        %v1322 = vsel %vm324, %v1319, 0
        %v1324 = vsel %vm324, %v1321, 0
        %1326 = vmatprep.subr.mxu0 0.0
        %1327 = vmatpush1.xpose.msra.mxu0 %v1324
        %1328 = vmatprep.subr.mxu0 0.0
        %1329 = vmatpush1.xpose.msra.mxu0 0.0
        %1330 = vmatprep.subr.mxu0 0.0
        %1331 = vmatpush1.xpose.msra.mxu0 0.0
        %1332 = vmatprep.subr.mxu0 0.0
        %1333 = vmatpush1.xpose.msra.mxu0 0.0
        %1334 = vmatprep.subr.mxu0 0.0
        %1335 = vmatpush1.xpose.msra.mxu0 0.0
        %1336 = vmatprep.subr.mxu0 0.0
        %1337 = vmatpush1.xpose.msra.mxu0 0.0
        %1338 = vmatprep.subr.mxu0 0.0
        %1339 = vmatpush1.xpose.msra.mxu0 0.0
        %1340 = vmatprep.subr.mxu0 0.0
        %1341 = vmatpush1.xpose.msra.mxu0 0.0
        %1342 = vmatprep.subr.mxu0 0.0
        %1343 = vmatpush1.xpose.msra.mxu0 0.0
        %1344 = vmatprep.subr.mxu0 0.0
        %1345 = vmatpush1.xpose.msra.mxu0 0.0
        %1346 = vmatprep.subr.mxu0 0.0
        %1347 = vmatpush1.xpose.msra.mxu0 0.0
        %1348 = vmatprep.subr.mxu0 0.0
        %1349 = vmatpush1.xpose.msra.mxu0 0.0
        %1350 = vmatprep.subr.mxu0 0.0
        %1351 = vmatpush1.xpose.msra.mxu0 0.0
        %1352 = vmatprep.subr.mxu0 0.0
        %1353 = vmatpush1.xpose.msra.mxu0 0.0
        %1354 = vmatprep.subr.mxu0 0.0
        %1355 = vmatpush1.xpose.msra.mxu0 0.0
        %1356 = vmatprep.subr.mxu0 0.0
        %1357 = vmatpush1.xpose.msra.mxu0 0.0
        %1358 = vmatprep.subr.mxu0 0.0
        %1359 = vmatpush1.xpose.msra.mxu0 0.0
        %1360 = vmatprep.subr.mxu0 0.0
        %1361 = vmatpush1.xpose.msra.mxu0 0.0
        %1362 = vmatprep.subr.mxu0 0.0
        %1363 = vmatpush1.xpose.msra.mxu0 0.0
        %1364 = vmatprep.subr.mxu0 0.0
        %1365 = vmatpush1.xpose.msra.mxu0 0.0
        %1366 = vmatprep.subr.mxu0 0.0
        %1367 = vmatpush1.xpose.msra.mxu0 0.0
        %1368 = vmatprep.subr.mxu0 0.0
        %1369 = vmatpush1.xpose.msra.mxu0 0.0
        %1370 = vmatprep.subr.mxu0 0.0
        %1371 = vmatpush1.xpose.msra.mxu0 0.0
        %1372 = vmatprep.subr.mxu0 0.0
        %1373 = vmatpush1.xpose.msra.mxu0 0.0
        %1374 = vmatprep.subr.mxu0 0.0
        %1375 = vmatpush1.xpose.msra.mxu0 0.0
        %1376 = vmatprep.subr.mxu0 0.0
        %1377 = vmatpush1.xpose.msra.mxu0 0.0
        %1378 = vmatprep.subr.mxu0 0.0
        %1379 = vmatpush1.xpose.msra.mxu0 0.0
        %1380 = vmatprep.subr.mxu0 0.0
        %1381 = vmatpush1.xpose.msra.mxu0 0.0
        %1382 = vmatprep.subr.mxu0 0.0
        %1383 = vmatpush1.xpose.msra.mxu0 0.0
        %1384 = vmatprep.subr.mxu0 0.0
        %1385 = vmatpush1.xpose.msra.mxu0 0.0
        %1386 = vmatprep.subr.mxu0 0.0
        %1387 = vmatpush1.xpose.msra.mxu0 0.0
        %1388 = vmatprep.subr.mxu0 0.0
        %1389 = vmatpush1.xpose.msra.mxu0 0.0
        %1390 = vmatprep.mubr.f32.mxu0 0.0
        %1391 = vmatmul.mubr.f32.gmra.mrb[0].mxu0 %v1322
        %v1392 = vpop.f32.mrb[0].mxu0
        %v1393 = vadd.f32 0.0, %v1392
        %v1394 = vpop.f32.mrb[0].mxu0
        %1395 = vdwg.mxu0
        %v1396 = vmul.f32 %v1393, 0.17677669
        %v1397 = vsel %vm400, %v1396, -inf
        %1398 = vmax.xlane.f32.xlu0 %v1397
        %v1399 = vpop.xlane.xlu0 %1398
        %v1400 = vsub.f32 %v1396, %v1399
        %v1401 = vmul.f32 %v1400, 1.442695
        %v1402 = vpow.pop %v1401
        %v1403 = vsel %vm400, %v1402, 0.0
        %1404 = vadd.xlane.f32.xlu0 %v1403
        %v1405 = vpop.xlane.xlu0 %1404
        %v1406 = vrcp.pop %v1405
        %v1407 = vmul.f32 %v1402, %v1406
        %1408 = vrot.lane.b32.xlu0 %v318, 40
        %v1409 = vpop.permute.xlu0 %1408
        %v1412 = vsel %vm400, %v1407, 0
        %1414 = vmatprep.subr.mxu0 0.0
        %1415 = vmatpush1.msra.mxu0 %v1409
        %1416 = vmatprep.subr.mxu0 0.0
        %1417 = vmatpush1.msra.mxu0 0.0
        %1418 = vmatprep.subr.mxu0 0.0
        %1419 = vmatpush1.msra.mxu0 0.0
        %1420 = vmatprep.subr.mxu0 0.0
        %1421 = vmatpush1.msra.mxu0 0.0
        %1422 = vmatprep.subr.mxu0 0.0
        %1423 = vmatpush1.msra.mxu0 0.0
        %1424 = vmatprep.subr.mxu0 0.0
        %1425 = vmatpush1.msra.mxu0 0.0
        %1426 = vmatprep.subr.mxu0 0.0
        %1427 = vmatpush1.msra.mxu0 0.0
        %1428 = vmatprep.subr.mxu0 0.0
        %1429 = vmatpush1.msra.mxu0 0.0
        %1430 = vmatprep.subr.mxu0 0.0
        %1431 = vmatpush1.msra.mxu0 0.0
        %1432 = vmatprep.subr.mxu0 0.0
        %1433 = vmatpush1.msra.mxu0 0.0
        %1434 = vmatprep.subr.mxu0 0.0
        %1435 = vmatpush1.msra.mxu0 0.0
        %1436 = vmatprep.subr.mxu0 0.0
        %1437 = vmatpush1.msra.mxu0 0.0
        %1438 = vmatprep.subr.mxu0 0.0
        %1439 = vmatpush1.msra.mxu0 0.0
        %1440 = vmatprep.subr.mxu0 0.0
        %1441 = vmatpush1.msra.mxu0 0.0
        %1442 = vmatprep.subr.mxu0 0.0
        %1443 = vmatpush1.msra.mxu0 0.0
        %1444 = vmatprep.subr.mxu0 0.0
        %1445 = vmatpush1.msra.mxu0 0.0
        %1446 = vmatprep.subr.mxu0 0.0
        %1447 = vmatpush1.msra.mxu0 0.0
        %1448 = vmatprep.subr.mxu0 0.0
        %1449 = vmatpush1.msra.mxu0 0.0
        %1450 = vmatprep.subr.mxu0 0.0
        %1451 = vmatpush1.msra.mxu0 0.0
        %1452 = vmatprep.subr.mxu0 0.0
        %1453 = vmatpush1.msra.mxu0 0.0
        %1454 = vmatprep.subr.mxu0 0.0
        %1455 = vmatpush1.msra.mxu0 0.0
        %1456 = vmatprep.subr.mxu0 0.0
        %1457 = vmatpush1.msra.mxu0 0.0
        %1458 = vmatprep.subr.mxu0 0.0
        %1459 = vmatpush1.msra.mxu0 0.0
        %1460 = vmatprep.subr.mxu0 0.0
        %1461 = vmatpush1.msra.mxu0 0.0
        %1462 = vmatprep.subr.mxu0 0.0
        %1463 = vmatpush1.msra.mxu0 0.0
        %1464 = vmatprep.subr.mxu0 0.0
        %1465 = vmatpush1.msra.mxu0 0.0
        %1466 = vmatprep.subr.mxu0 0.0
        %1467 = vmatpush1.msra.mxu0 0.0
        %1468 = vmatprep.subr.mxu0 0.0
        %1469 = vmatpush1.msra.mxu0 0.0
        %1470 = vmatprep.subr.mxu0 0.0
        %1471 = vmatpush1.msra.mxu0 0.0
        %1472 = vmatprep.subr.mxu0 0.0
        %1473 = vmatpush1.msra.mxu0 0.0
        %1474 = vmatprep.subr.mxu0 0.0
        %1475 = vmatpush1.msra.mxu0 0.0
        %1476 = vmatprep.subr.mxu0 0.0
        %1477 = vmatpush1.msra.mxu0 0.0
        %1478 = vmatprep.mubr.f32.mxu0 0.0
        %1479 = vmatmul.mubr.f32.gmra.mrb[0].mxu0 %v1412
        %v1480 = vpop.f32.mrb[0].mxu0
        %v1481 = vadd.f32 0.0, %v1480
        %v1482 = vpop.f32.mrb[0].mxu0
        %1483 = vdwg.mxu0
        %1484 = vrot.lane.b32.xlu0 %v318, 100
        %v1485 = vpop.permute.xlu0 %1484
        %1486 = vrot.lane.b32.xlu0 %v318, 68
        %v1487 = vpop.permute.xlu0 %1486
        %v1488 = vsel %vm324, %v1485, 0
        %v1490 = vsel %vm324, %v1487, 0
        %1492 = vmatprep.subr.mxu0 0.0
        %1493 = vmatpush1.xpose.msra.mxu0 %v1490
        %1494 = vmatprep.subr.mxu0 0.0
        %1495 = vmatpush1.xpose.msra.mxu0 0.0
        %1496 = vmatprep.subr.mxu0 0.0
        %1497 = vmatpush1.xpose.msra.mxu0 0.0
        %1498 = vmatprep.subr.mxu0 0.0
        %1499 = vmatpush1.xpose.msra.mxu0 0.0
        %1500 = vmatprep.subr.mxu0 0.0
        %1501 = vmatpush1.xpose.msra.mxu0 0.0
        %1502 = vmatprep.subr.mxu0 0.0
        %1503 = vmatpush1.xpose.msra.mxu0 0.0
        %1504 = vmatprep.subr.mxu0 0.0
        %1505 = vmatpush1.xpose.msra.mxu0 0.0
        %1506 = vmatprep.subr.mxu0 0.0
        %1507 = vmatpush1.xpose.msra.mxu0 0.0
        %1508 = vmatprep.subr.mxu0 0.0
        %1509 = vmatpush1.xpose.msra.mxu0 0.0
        %1510 = vmatprep.subr.mxu0 0.0
        %1511 = vmatpush1.xpose.msra.mxu0 0.0
        %1512 = vmatprep.subr.mxu0 0.0
        %1513 = vmatpush1.xpose.msra.mxu0 0.0
        %1514 = vmatprep.subr.mxu0 0.0
        %1515 = vmatpush1.xpose.msra.mxu0 0.0
        %1516 = vmatprep.subr.mxu0 0.0
        %1517 = vmatpush1.xpose.msra.mxu0 0.0
        %1518 = vmatprep.subr.mxu0 0.0
        %1519 = vmatpush1.xpose.msra.mxu0 0.0
        %1520 = vmatprep.subr.mxu0 0.0
        %1521 = vmatpush1.xpose.msra.mxu0 0.0
        %1522 = vmatprep.subr.mxu0 0.0
        %1523 = vmatpush1.xpose.msra.mxu0 0.0
        %1524 = vmatprep.subr.mxu0 0.0
        %1525 = vmatpush1.xpose.msra.mxu0 0.0
        %1526 = vmatprep.subr.mxu0 0.0
        %1527 = vmatpush1.xpose.msra.mxu0 0.0
        %1528 = vmatprep.subr.mxu0 0.0
        %1529 = vmatpush1.xpose.msra.mxu0 0.0
        %1530 = vmatprep.subr.mxu0 0.0
        %1531 = vmatpush1.xpose.msra.mxu0 0.0
        %1532 = vmatprep.subr.mxu0 0.0
        %1533 = vmatpush1.xpose.msra.mxu0 0.0
        %1534 = vmatprep.subr.mxu0 0.0
        %1535 = vmatpush1.xpose.msra.mxu0 0.0
        %1536 = vmatprep.subr.mxu0 0.0
        %1537 = vmatpush1.xpose.msra.mxu0 0.0
        %1538 = vmatprep.subr.mxu0 0.0
        %1539 = vmatpush1.xpose.msra.mxu0 0.0
        %1540 = vmatprep.subr.mxu0 0.0
        %1541 = vmatpush1.xpose.msra.mxu0 0.0
        %1542 = vmatprep.subr.mxu0 0.0
        %1543 = vmatpush1.xpose.msra.mxu0 0.0
        %1544 = vmatprep.subr.mxu0 0.0
        %1545 = vmatpush1.xpose.msra.mxu0 0.0
        %1546 = vmatprep.subr.mxu0 0.0
        %1547 = vmatpush1.xpose.msra.mxu0 0.0
        %1548 = vmatprep.subr.mxu0 0.0
        %1549 = vmatpush1.xpose.msra.mxu0 0.0
        %1550 = vmatprep.subr.mxu0 0.0
        %1551 = vmatpush1.xpose.msra.mxu0 0.0
        %1552 = vmatprep.subr.mxu0 0.0
        %1553 = vmatpush1.xpose.msra.mxu0 0.0
        %1554 = vmatprep.subr.mxu0 0.0
        %1555 = vmatpush1.xpose.msra.mxu0 0.0
        %1556 = vmatprep.mubr.f32.mxu0 0.0
        %1557 = vmatmul.mubr.f32.gmra.mrb[0].mxu0 %v1488
        %v1558 = vpop.f32.mrb[0].mxu0
        %v1559 = vadd.f32 0.0, %v1558
        %v1560 = vpop.f32.mrb[0].mxu0
        %1561 = vdwg.mxu0
        %v1562 = vmul.f32 %v1559, 0.17677669
        %v1563 = vsel %vm400, %v1562, -inf
        %1564 = vmax.xlane.f32.xlu0 %v1563
        %v1565 = vpop.xlane.xlu0 %1564
        %v1566 = vsub.f32 %v1562, %v1565
        %v1567 = vmul.f32 %v1566, 1.442695
        %v1568 = vpow.pop %v1567
        %v1569 = vsel %vm400, %v1568, 0.0
        %1570 = vadd.xlane.f32.xlu0 %v1569
        %v1571 = vpop.xlane.xlu0 %1570
        %v1572 = vrcp.pop %v1571
        %v1573 = vmul.f32 %v1568, %v1572
        %1574 = vrot.lane.b32.xlu0 %v318, 36
        %v1575 = vpop.permute.xlu0 %1574
        %v1578 = vsel %vm400, %v1573, 0
        %1580 = vmatprep.subr.mxu0 0.0
        %1581 = vmatpush1.msra.mxu0 %v1575
        %1582 = vmatprep.subr.mxu0 0.0
        %1583 = vmatpush1.msra.mxu0 0.0
        %1584 = vmatprep.subr.mxu0 0.0
        %1585 = vmatpush1.msra.mxu0 0.0
        %1586 = vmatprep.subr.mxu0 0.0
        %1587 = vmatpush1.msra.mxu0 0.0
        %1588 = vmatprep.subr.mxu0 0.0
        %1589 = vmatpush1.msra.mxu0 0.0
        %1590 = vmatprep.subr.mxu0 0.0
        %1591 = vmatpush1.msra.mxu0 0.0
        %1592 = vmatprep.subr.mxu0 0.0
        %1593 = vmatpush1.msra.mxu0 0.0
        %1594 = vmatprep.subr.mxu0 0.0
        %1595 = vmatpush1.msra.mxu0 0.0
        %1596 = vmatprep.subr.mxu0 0.0
        %1597 = vmatpush1.msra.mxu0 0.0
        %1598 = vmatprep.subr.mxu0 0.0
        %1599 = vmatpush1.msra.mxu0 0.0
        %1600 = vmatprep.subr.mxu0 0.0
        %1601 = vmatpush1.msra.mxu0 0.0
        %1602 = vmatprep.subr.mxu0 0.0
        %1603 = vmatpush1.msra.mxu0 0.0
        %1604 = vmatprep.subr.mxu0 0.0
        %1605 = vmatpush1.msra.mxu0 0.0
        %1606 = vmatprep.subr.mxu0 0.0
        %1607 = vmatpush1.msra.mxu0 0.0
        %1608 = vmatprep.subr.mxu0 0.0
        %1609 = vmatpush1.msra.mxu0 0.0
        %1610 = vmatprep.subr.mxu0 0.0
        %1611 = vmatpush1.msra.mxu0 0.0
        %1612 = vmatprep.subr.mxu0 0.0
        %1613 = vmatpush1.msra.mxu0 0.0
        %1614 = vmatprep.subr.mxu0 0.0
        %1615 = vmatpush1.msra.mxu0 0.0
        %1616 = vmatprep.subr.mxu0 0.0
        %1617 = vmatpush1.msra.mxu0 0.0
        %1618 = vmatprep.subr.mxu0 0.0
        %1619 = vmatpush1.msra.mxu0 0.0
        %1620 = vmatprep.subr.mxu0 0.0
        %1621 = vmatpush1.msra.mxu0 0.0
        %1622 = vmatprep.subr.mxu0 0.0
        %1623 = vmatpush1.msra.mxu0 0.0
        %1624 = vmatprep.subr.mxu0 0.0
        %1625 = vmatpush1.msra.mxu0 0.0
        %1626 = vmatprep.subr.mxu0 0.0
        %1627 = vmatpush1.msra.mxu0 0.0
        %1628 = vmatprep.subr.mxu0 0.0
        %1629 = vmatpush1.msra.mxu0 0.0
        %1630 = vmatprep.subr.mxu0 0.0
        %1631 = vmatpush1.msra.mxu0 0.0
        %1632 = vmatprep.subr.mxu0 0.0
        %1633 = vmatpush1.msra.mxu0 0.0
        %1634 = vmatprep.subr.mxu0 0.0
        %1635 = vmatpush1.msra.mxu0 0.0
        %1636 = vmatprep.subr.mxu0 0.0
        %1637 = vmatpush1.msra.mxu0 0.0
        %1638 = vmatprep.subr.mxu0 0.0
        %1639 = vmatpush1.msra.mxu0 0.0
        %1640 = vmatprep.subr.mxu0 0.0
        %1641 = vmatpush1.msra.mxu0 0.0
        %1642 = vmatprep.subr.mxu0 0.0
        %1643 = vmatpush1.msra.mxu0 0.0
        %1644 = vmatprep.mubr.f32.mxu0 0.0
        %1645 = vmatmul.mubr.f32.gmra.mrb[0].mxu0 %v1578
        %v1646 = vpop.f32.mrb[0].mxu0
        %v1647 = vadd.f32 0.0, %v1646
        %v1648 = vpop.f32.mrb[0].mxu0
        %1649 = vdwg.mxu0
        %1651 = vrot.lane.b32.xlu0 %v651, 4
        %v1652 = vpop.permute.xlu0 %1651
        %1655 = vrot.lane.b32.xlu0 %v817, 8
        %v1656 = vpop.permute.xlu0 %1655
        %1659 = vrot.lane.b32.xlu0 %v983, 12
        %v1660 = vpop.permute.xlu0 %1659
        %1663 = vrot.lane.b32.xlu0 %v1149, 16
        %v1664 = vpop.permute.xlu0 %1663
        %1667 = vrot.lane.b32.xlu0 %v1315, 20
        %v1668 = vpop.permute.xlu0 %1667
        %1671 = vrot.lane.b32.xlu0 %v1481, 24
        %v1672 = vpop.permute.xlu0 %1671
        %1675 = vrot.lane.b32.xlu0 %v1647, 28
        %v1676 = vpop.permute.xlu0 %1675
        %v1678 = vsel %vm324, %v485, %v1652
        %v1679 = vsel %vm400, %v1678, %v1656
        %vm1680 = vcmask 97280
        %v1681 = vsel %vm1680, %v1679, %v1660
        %vm1682 = vcmask 130048
        %v1683 = vsel %vm1682, %v1681, %v1664
        %vm1684 = vcmask 162816
        %v1685 = vsel %vm1684, %v1683, %v1668
        %vm1686 = vcmask 195584
        %v1687 = vsel %vm1686, %v1685, %v1672
        %vm1688 = vcmask 228352
        %v1689 = vsel %vm1688, %v1687, %v1676
        %v1690 = vld [vmem:[#allocation7] sm:$0xff]
        %v1691 = vld [vmem:[#allocation7 + $0x8] sm:$0xff]
        %v1692 = vld [vmem:[#allocation7 + $0x10] sm:$0xff]
        %v1693 = vld [vmem:[#allocation7 + $0x18] sm:$0xff]
        %v1694 = vld [vmem:[%s3] sm:$0x1]
        %v1696 = vlaneseq
        %v1697 = vshrl.u32 %v1696, 7
        %v1698 = vsub.s32 0, %v1697
        %v1699 = vrot.slane %v1694, %v1698
        %v1702 = vsel %vm247, %v1689, 0
        %1704 = vmatprep.subr.mxu0 0.0
        %1705 = vmatpush1.msra.mxu0 %v1690
        %1706 = vmatprep.subr.mxu0 0.0
        %1707 = vmatpush1.msra.mxu0 %v1691
        %1708 = vmatprep.subr.mxu0 0.0
        %1709 = vmatpush1.msra.mxu0 %v1692
        %1710 = vmatprep.subr.mxu0 0.0
        %1711 = vmatpush1.msra.mxu0 %v1693
        %1712 = vmatprep.subr.mxu0 0.0
        %1713 = vmatpush1.msra.mxu0 0.0
        %1714 = vmatprep.subr.mxu0 0.0
        %1715 = vmatpush1.msra.mxu0 0.0
        %1716 = vmatprep.subr.mxu0 0.0
        %1717 = vmatpush1.msra.mxu0 0.0
        %1718 = vmatprep.subr.mxu0 0.0
        %1719 = vmatpush1.msra.mxu0 0.0
        %1720 = vmatprep.subr.mxu0 0.0
        %1721 = vmatpush1.msra.mxu0 0.0
        %1722 = vmatprep.subr.mxu0 0.0
        %1723 = vmatpush1.msra.mxu0 0.0
        %1724 = vmatprep.subr.mxu0 0.0
        %1725 = vmatpush1.msra.mxu0 0.0
        %1726 = vmatprep.subr.mxu0 0.0
        %1727 = vmatpush1.msra.mxu0 0.0
        %1728 = vmatprep.subr.mxu0 0.0
        %1729 = vmatpush1.msra.mxu0 0.0
        %1730 = vmatprep.subr.mxu0 0.0
        %1731 = vmatpush1.msra.mxu0 0.0
        %1732 = vmatprep.subr.mxu0 0.0
        %1733 = vmatpush1.msra.mxu0 0.0
        %1734 = vmatprep.subr.mxu0 0.0
        %1735 = vmatpush1.msra.mxu0 0.0
        %1736 = vmatprep.subr.mxu0 0.0
        %1737 = vmatpush1.msra.mxu0 0.0
        %1738 = vmatprep.subr.mxu0 0.0
        %1739 = vmatpush1.msra.mxu0 0.0
        %1740 = vmatprep.subr.mxu0 0.0
        %1741 = vmatpush1.msra.mxu0 0.0
        %1742 = vmatprep.subr.mxu0 0.0
        %1743 = vmatpush1.msra.mxu0 0.0
        %1744 = vmatprep.subr.mxu0 0.0
        %1745 = vmatpush1.msra.mxu0 0.0
        %1746 = vmatprep.subr.mxu0 0.0
        %1747 = vmatpush1.msra.mxu0 0.0
        %1748 = vmatprep.subr.mxu0 0.0
        %1749 = vmatpush1.msra.mxu0 0.0
        %1750 = vmatprep.subr.mxu0 0.0
        %1751 = vmatpush1.msra.mxu0 0.0
        %1752 = vmatprep.subr.mxu0 0.0
        %1753 = vmatpush1.msra.mxu0 0.0
        %1754 = vmatprep.subr.mxu0 0.0
        %1755 = vmatpush1.msra.mxu0 0.0
        %1756 = vmatprep.subr.mxu0 0.0
        %1757 = vmatpush1.msra.mxu0 0.0
        %1758 = vmatprep.subr.mxu0 0.0
        %1759 = vmatpush1.msra.mxu0 0.0
        %1760 = vmatprep.subr.mxu0 0.0
        %1761 = vmatpush1.msra.mxu0 0.0
        %1762 = vmatprep.subr.mxu0 0.0
        %1763 = vmatpush1.msra.mxu0 0.0
        %1764 = vmatprep.subr.mxu0 0.0
        %1765 = vmatpush1.msra.mxu0 0.0
        %1766 = vmatprep.subr.mxu0 0.0
        %1767 = vmatpush1.msra.mxu0 0.0
        %1768 = vmatprep.mubr.f32.mxu0 0.0
        %1769 = vmatmul.mubr.f32.gmra.mrb[0].mxu0 %v1702
        %v1770 = vpop.f32.mrb[0].mxu0
        %v1771 = vadd.f32 %v1699, %v1770
        %v1772 = vpop.f32.mrb[0].mxu0
        %1773 = vdwg.mxu0
        %1774 = vst.msk [vmem:[%s241] sm:$0xff] %vm247, %v1771
        %s1775 = sand.u32 %s119, 1
        %s1776 = scalar_lea.sflag [#allocation4], %s1775
        %s1777 = sand.u32 %s119, 1
        %s1778 = smul.addr %s1777, 8
        %s1779 = scalar_lea.vmem [#allocation8], %s1778
        // Predicated region
        $region49: #{tpu_custom_call.1} parent=35 // pred_check
          %p1780 = pneg %p129
        $region50: #{tpu_custom_call.1} parent=35 // pred_check_branch
          %1782 = sbr.rel (%p1780) target = $region52
        $region51: #{tpu_custom_call.1} parent=35 // pred_region
          %s1784 = ssub.s32 128, 128
          %1785 = vsyncadd %s1776, %s1784
          %s1786 = smul.addr %s22, 128
          %s1787 = scalar_lea.hbm %s4, %s1786
          %s1789 = sshll.u32 %s1779, 4
          %s1790 = int_to_ptr.vmem [resolvable:$true] %s1789
          %1792 = dma.vmem_to_hbm [thread:$0]  %s1790, 128, %s1787, %s1776
        $region52: #{tpu_custom_call.1} parent=35 // pred_fallthru
          _
      $region36: #{tpu_custom_call.1} parent=5 // pred_fallthru
        _
      %p1793 = scmp.le.s32.totalorder 2, %s17
      // Predicated region
      $region53: #{tpu_custom_call.1} parent=5 // pred_check
        %p1794 = pneg %p1793
      $region54: #{tpu_custom_call.1} parent=5 // pred_check_branch
        %1796 = sbr.rel (%p1794) target = $region56
      $region55: #{tpu_custom_call.1} parent=5 // pred_region
        %s1797 = ssub.s32 %s17, 2
        // Predicated region
        $region57: #{tpu_custom_call.1} parent=55 // pred_check
          %p1798 = pneg %p135
        $region58: #{tpu_custom_call.1} parent=55 // pred_check_branch
          %1800 = sbr.rel (%p1798) target = $region60
        $region59: #{tpu_custom_call.1} parent=55 // pred_region
          %s1801 = sand.u32 %s120, 1
          %s1802 = scalar_lea.sflag [#allocation4], %s1801
          %s1803 = sand.u32 %s120, 1
          %s1804 = smul.addr %s1803, 8
          %s1805 = scalar_lea.vmem [#allocation8], %s1804
          %1806 = dma.done %s1802, 128
        $region60: #{tpu_custom_call.1} parent=55 // pred_fallthru
          _
      $region56: #{tpu_custom_call.1} parent=5 // pred_fallthru
        _
    $region6: #{tpu_custom_call.1} parent=1 // loop_footer
      %s21 = sadd.s32 1, %s17
    $region7: #{tpu_custom_call.1} parent=1 // loop_footer_branch
      %16 = sbr.rel target = $region3
    $region8: #{tpu_custom_call.1} parent=1 // loop_exit
      _
    %1807 = vsyncpa [#allocation3], 1
    %s1808 = scalar_lea.sflag [#allocation3], 1
    %1809 = vsyncpa %s1808, 1
    %1810 = vsyncpa [#allocation6], 1
    %1811 = vsyncpa [#allocation4], 1
    %s1812 = scalar_lea.sflag [#allocation4], 1
    %1813 = vsyncpa %s1812, 1

</llo_original>
